<compile_context>
chip_gen: v6e
topology: v6e:2x2x1
jax: 0.10.0
libtpu: 0.0.40
codegen_flags: <defaults>
</compile_context>

<pallas_src>
import functools

import jax
import jax.numpy as jnp
from jax.experimental import pallas as pl
from jax.experimental.pallas import tpu as pltpu

_LANE = 128            # feature dims padded to multiples of this (vreg lane width)
_MAX_TILE_B = 512      # cap on the batch tile (rows per grid step)


def _round_up(x, m):
    return ((x + m - 1) // m) * m


def _cdiv(a, b):
    return -(-a // b)


def _min_sublane(dtype):
    """Minimum second-to-last tile dim for this dtype (sub-32-bit packs sublanes)."""
    return {4: 8, 2: 16, 1: 32}.get(jnp.dtype(dtype).itemsize, 8)


def _default_vmem_limit_bytes():
    """Generation-aware scoped-VMEM limit: 3/4 of physical, capped at 100 MiB
    (~96 MiB on v5e/v6e with 128 MiB physical, 48 MiB on v7x with 64 MiB)."""
    try:
        cap = int(pltpu.get_tpu_info().vmem_capacity_bytes)
        return min(100 * 1024 * 1024, (cap * 3) // 4)
    except Exception:
        return 48 * 1024 * 1024   # safe on every current generation


_VMEM_LIMIT_BYTES = _default_vmem_limit_bytes()


def _choose_tile_b(batch, sublane):
    """Batch tile: >= 2 grid steps when the batch allows (v7x megacore), padding
    bounded to < one sublane row per tile, tile capped at _MAX_TILE_B, and
    128-aligned only when that costs no meaningful extra padding."""
    b_r = _round_up(batch, sublane)
    if b_r <= 2 * sublane:
        return b_r                                   # too small to split usefully
    n_tiles = max(2, _cdiv(b_r, _MAX_TILE_B))
    tile = _round_up(_cdiv(b_r, n_tiles), sublane)
    tile_128 = _round_up(tile, 128)                  # MXU-friendly M when ~free
    if (_cdiv(b_r, tile_128) >= 2
            and _cdiv(b_r, tile_128) * tile_128 - b_r <= n_tiles * sublane):
        tile = tile_128
    return tile


def _activation(y, name, *, approx_recip=False):
    """Elementwise activation.  approx_recip=True uses the EUP approx reciprocal
    for sigmoid (hidden layers only; the output layer stays exact)."""
    if name == "relu":
        return jnp.maximum(y, 0.0)
    if name == "sigmoid":
        denom = 1.0 + jnp.exp(-y)
        return pl.reciprocal(denom, approx=True) if approx_recip else 1.0 / denom
    if name == "tanh":
        return jnp.tanh(y)
    if name == "identity":
        return y
    raise ValueError(f"unsupported activation: {name}")


def fused_mlp_kernel(x_ref, w_in_ref, b_in_ref, w_hid_ref, b_hid_ref,
                     w_out_ref, b_out_ref, o_ref, *,
                     n_hidden: int, hidden_activ: str, output_activ: str):
    """output_activ(W_out @ ... hidden_activ(W_in @ x + b_in) ... + b_out).
    Activations are carried as values (vregs); weights stay VMEM-resident."""
    dtype = x_ref.dtype
    # Input layer: MXU matmul in native dtype, f32 accumulate, VPU/EUP epilogue.
    h = jnp.dot(x_ref[...], w_in_ref[...], preferred_element_type=jnp.float32)
    h = _activation(h + b_in_ref[...].astype(jnp.float32), hidden_activ,
                    approx_recip=True).astype(dtype)

    # Hidden layers: n_hidden is small & static -> unrolled Python loop with
    # static weight-stack indices; no VMEM scratch round-trip between layers.
    for i in range(n_hidden):
        z = jnp.dot(h, w_hid_ref[i], preferred_element_type=jnp.float32)
        h = _activation(z + b_hid_ref[i].astype(jnp.float32), hidden_activ,
                        approx_recip=True).astype(dtype)

    # Output layer: exact activation (user-visible), one lane-dense store.
    y = jnp.dot(h, w_out_ref[...], preferred_element_type=jnp.float32)
    y = _activation(y + b_out_ref[...].astype(jnp.float32), output_activ,
                    approx_recip=False)
    o_ref[...] = y.astype(o_ref.dtype)


def _resident_spec(shape, single_buffer):
    """BlockSpec for a VMEM-resident operand (block == whole array, constant
    index_map).  single_buffer=True drops the dead second pipeline buffer."""
    zeros = (0,) * len(shape)
    index_map = lambda i: zeros
    if single_buffer:
        return pl.BlockSpec(shape, index_map, pipeline_mode=pl.Buffered(1))
    return pl.BlockSpec(shape, index_map)


@functools.partial(jax.jit,
                   static_argnames=("n_hidden", "hidden_activ", "output_activ",
                                    "out_features", "single_buffer_weights"))
def fused_mlp(x, w_in_p, b_in_p, w_hid_p, b_hid_p, w_out_p, b_out_p, *,
              n_hidden: int, hidden_activ: str, output_activ: str,
              out_features: int, single_buffer_weights: bool = True):
    """x: (B, F_in).  Padded params are built once at model init:
       w_in_p (F_in_p, H_p), w_hid_p (n_hidden, H_p, H_p) [or (1,8,128) dummy],
       w_out_p (H_p, F_out_p), biases (1, dim_p)."""
    B, F_in = x.shape
    F_in_p, H_p = w_in_p.shape
    F_out_p = w_out_p.shape[1]
    dtype = x.dtype

    sublane = _min_sublane(dtype)
    tile_b = _choose_tile_b(B, sublane)
    B_p = _round_up(B, tile_b)
    grid_b = B_p // tile_b

    # Only the activations are padded per call; padding rows/cols are zero so
    # they do not perturb the real outputs (sliced away below).
    if (B_p, F_in_p) != (B, F_in):
        x_p = jnp.zeros((B_p, F_in_p), dtype).at[:B, :F_in].set(x)
    else:
        x_p = x

    kernel = functools.partial(fused_mlp_kernel, n_hidden=n_hidden,
                               hidden_activ=hidden_activ, output_activ=output_activ)

    # Advisory cost estimate for XLA scheduling.
    flops = 2 * B_p * (F_in_p * H_p + n_hidden * H_p * H_p + H_p * F_out_p)
    transc = {"sigmoid": 1, "tanh": 1}
    transcendentals = (transc.get(hidden_activ, 0) * B_p * H_p * (n_hidden + 1)
                       + transc.get(output_activ, 0) * B_p * F_out_p)
    elem = jnp.dtype(dtype).itemsize
    bytes_accessed = elem * (x_p.size + w_in_p.size + b_in_p.size + w_hid_p.size
                             + b_hid_p.size + w_out_p.size + b_out_p.size
                             + B_p * F_out_p)

    out_p = pl.pallas_call(
        kernel,
        out_shape=jax.ShapeDtypeStruct((B_p, F_out_p), dtype),
        grid=(grid_b,),
        in_specs=[
            pl.BlockSpec((tile_b, F_in_p), lambda i: (i, 0)),            # x batch tile
            _resident_spec(w_in_p.shape, single_buffer_weights),          # W_in (resident)
            _resident_spec(b_in_p.shape, single_buffer_weights),          # b_in
            _resident_spec(w_hid_p.shape, single_buffer_weights),         # stacked hidden W
            _resident_spec(b_hid_p.shape, single_buffer_weights),         # stacked hidden b
            _resident_spec(w_out_p.shape, single_buffer_weights),         # W_out
            _resident_spec(b_out_p.shape, single_buffer_weights),         # b_out
        ],
        out_specs=pl.BlockSpec((tile_b, F_out_p), lambda i: (i, 0)),
        compiler_params=pltpu.CompilerParams(
            dimension_semantics=("parallel",),   # batch tiles shard across v7x's 2 TCs
            vmem_limit_bytes=_VMEM_LIMIT_BYTES,
        ),
        cost_estimate=pl.CostEstimate(flops=flops, transcendentals=transcendentals,
                                      bytes_accessed=bytes_accessed),
    )(x_p, w_in_p, b_in_p, w_hid_p, b_hid_p, w_out_p, b_out_p)

    return out_p[:B, :out_features]


def init_linear_params(key, fan_in, fan_out, dtype=jnp.float32):
    """PyTorch nn.Linear default init: U(-1/sqrt(fan_in), 1/sqrt(fan_in)).
    Weight stored pre-transposed as (F_in, F_out)."""
    kw, kb = jax.random.split(key)
    bound = 1.0 / float(fan_in) ** 0.5
    w = jax.random.uniform(kw, (fan_in, fan_out), dtype=dtype, minval=-bound, maxval=bound)
    b = jax.random.uniform(kb, (1, fan_out), dtype=dtype, minval=-bound, maxval=bound)
    return w, b


class LinearModelPallas:
    """Pallas port of LinearModel: hidden_activ(l_in) -> (n_layers-1) hidden -> output_activ(l_out)."""

    def __init__(self, input_size, output_size, n_layers, hidden_size,
                 hidden_activ="relu", output_activ="sigmoid", key=None,
                 dtype=jnp.float32):
        if key is None:
            key = jax.random.PRNGKey(0)
        keys = jax.random.split(key, n_layers + 1)
        self.hidden_activ = hidden_activ
        self.output_activ = output_activ
        self.output_size = output_size
        self.n_hidden = n_layers - 1

        # Raw (unpadded) params — kept only for the pure-JAX reference.
        self.w_in, self.b_in = init_linear_params(keys[0], input_size, hidden_size, dtype)
        self.hidden = [init_linear_params(keys[1 + i], hidden_size, hidden_size, dtype)
                       for i in range(self.n_hidden)]
        self.w_out, self.b_out = init_linear_params(keys[n_layers], hidden_size, output_size, dtype)

        # Lane-dense padded copies, built ONCE here (not per forward pass).
        F_in_p = _round_up(input_size, _LANE)
        H_p = _round_up(hidden_size, _LANE)
        F_out_p = _round_up(output_size, _LANE)
        self.w_in_p = jnp.zeros((F_in_p, H_p), dtype).at[:input_size, :hidden_size].set(self.w_in)
        self.b_in_p = jnp.zeros((1, H_p), dtype).at[:, :hidden_size].set(self.b_in)
        if self.n_hidden > 0:
            w_hid = jnp.stack([w for w, _ in self.hidden])     # (n_hidden, H, H)
            b_hid = jnp.stack([b for _, b in self.hidden])     # (n_hidden, 1, H)
            self.w_hid_p = (jnp.zeros((self.n_hidden, H_p, H_p), dtype)
                            .at[:, :hidden_size, :hidden_size].set(w_hid))
            self.b_hid_p = (jnp.zeros((self.n_hidden, 1, H_p), dtype)
                            .at[:, :, :hidden_size].set(b_hid))
        else:
            # Tiny dummy block; the kernel never reads it when n_hidden == 0.
            self.w_hid_p = jnp.zeros((1, 8, 128), dtype)
            self.b_hid_p = jnp.zeros((1, 1, 128), dtype)
        self.w_out_p = jnp.zeros((H_p, F_out_p), dtype).at[:hidden_size, :output_size].set(self.w_out)
        self.b_out_p = jnp.zeros((1, F_out_p), dtype).at[:, :output_size].set(self.b_out)

        # Prefer single-buffered weight BlockSpecs; fall back if this build rejects it.
        self._single_buffer = hasattr(pl, "Buffered")

    def _forward(self, inputs, single_buffer_weights):
        return fused_mlp(inputs, self.w_in_p, self.b_in_p, self.w_hid_p, self.b_hid_p,
                         self.w_out_p, self.b_out_p,
                         n_hidden=self.n_hidden,
                         hidden_activ=self.hidden_activ,
                         output_activ=self.output_activ,
                         out_features=self.output_size,
                         single_buffer_weights=single_buffer_weights)

    def __call__(self, inputs):
        if self._single_buffer:
            try:
                return self._forward(inputs, True)
            except Exception:
                # This JAX/Mosaic build rejected pl.Buffered(1) on pallas_call
                # BlockSpecs; use default double-buffered weights instead.
                self._single_buffer = False
        return self._forward(inputs, False)


def reference_forward(model: LinearModelPallas, inputs):
    """Pure-JAX reference of the same forward pass (for correctness checking)."""
    x = _activation(inputs @ model.w_in + model.b_in, model.hidden_activ)
    for w, b in model.hidden:
        x = _activation(x @ w + b, model.hidden_activ)
    return _activation(x @ model.w_out + model.b_out, model.output_activ)


if __name__ == "__main__":
    key = jax.random.PRNGKey(0)
    k_in, k_model = jax.random.split(key)

    batch = 32            # > 2*sublane -> exercises the 2-tile (megacore) grid path
    input_size = 16
    hidden_size = 32
    output_size = 4
    n_layers = 3          # l_in + 2 hidden layers + l_out

    x = jax.random.normal(k_in, (batch, input_size), dtype=jnp.float32)

    model = LinearModelPallas(
        input_size=input_size,
        output_size=output_size,
        n_layers=n_layers,
        hidden_size=hidden_size,
        hidden_activ="relu",
        output_activ="sigmoid",
        key=k_model,
    )

    out = jax.block_until_ready(model(x))
    ref = jax.block_until_ready(reference_forward(model, x))

    assert out.shape == (batch, output_size), out.shape
    # Remaining diff vs the pure-JAX reference is matmul accumulation-order /
    # precision only: the output sigmoid is exact, and the approx reciprocal is
    # used only inside hidden-layer sigmoids (none here with ReLU hidden).
    assert jnp.allclose(out, ref, atol=2e-3, rtol=2e-3), "mismatch vs reference"

    print("KERNEL_OK")
</pallas_src>

<mosaic_0001>
module attributes {stable_mosaic.version = 11 : i64} {
  func.func @fused_mlp_kernel(%arg0: i32, %arg1: memref<16x128xf32, #tpu.memory_space<vmem>>, %arg2: memref<128x128xf32, #tpu.memory_space<vmem>>, %arg3: memref<1x128xf32, #tpu.memory_space<vmem>>, %arg4: memref<2x128x128xf32, #tpu.memory_space<vmem>>, %arg5: memref<2x1x128xf32, #tpu.memory_space<vmem>>, %arg6: memref<128x128xf32, #tpu.memory_space<vmem>>, %arg7: memref<1x128xf32, #tpu.memory_space<vmem>>, %arg8: memref<16x128xf32, #tpu.memory_space<vmem>>) attributes {dimension_semantics = [#tpu.dimension_semantics<parallel>], iteration_bounds = array<i64: 2>, scalar_prefetch = 0 : i64, scratch_operands = 0 : i64, tpu.core_type = #tpu.core_type<tc>, window_params = [{transform_indices = @transform_0, window_bounds = array<i64: 16, 128>}, {pipeline_mode = #tpu.pipeline_mode<synchronous>, transform_indices = @transform_1, window_bounds = array<i64: 128, 128>}, {pipeline_mode = #tpu.pipeline_mode<synchronous>, transform_indices = @transform_2, window_bounds = array<i64: 1, 128>}, {pipeline_mode = #tpu.pipeline_mode<synchronous>, transform_indices = @transform_3, window_bounds = array<i64: 2, 128, 128>}, {pipeline_mode = #tpu.pipeline_mode<synchronous>, transform_indices = @transform_4, window_bounds = array<i64: 2, 1, 128>}, {pipeline_mode = #tpu.pipeline_mode<synchronous>, transform_indices = @transform_5, window_bounds = array<i64: 128, 128>}, {pipeline_mode = #tpu.pipeline_mode<synchronous>, transform_indices = @transform_6, window_bounds = array<i64: 1, 128>}, {transform_indices = @transform_7, window_bounds = array<i64: 16, 128>}]} {
    %c0 = arith.constant 0 : index
    %c0_0 = arith.constant 0 : index
    %0 = vector.load %arg1[%c0, %c0_0] : memref<16x128xf32, #tpu.memory_space<vmem>>, vector<16x128xf32>
    %c0_1 = arith.constant 0 : index
    %c0_2 = arith.constant 0 : index
    %1 = vector.load %arg2[%c0_1, %c0_2] : memref<128x128xf32, #tpu.memory_space<vmem>>, vector<128x128xf32>
    %cst = arith.constant dense<0.000000e+00> : vector<16x128xf32>
    %2 = tpu.matmul %0, %1, %cst {dimension_numbers = #tpu.dot_dimension_numbers<[1], [0], [0], [1], [0, 0, 1, 1], [], []>} : vector<16x128xf32>, vector<128x128xf32>, vector<16x128xf32> -> vector<16x128xf32>
    %c0_3 = arith.constant 0 : index
    %c0_4 = arith.constant 0 : index
    %3 = vector.load %arg3[%c0_3, %c0_4] : memref<1x128xf32, #tpu.memory_space<vmem>>, vector<1x128xf32>
    %4 = vector.broadcast %3 : vector<1x128xf32> to vector<16x128xf32>
    %5 = arith.addf %2, %4 : vector<16x128xf32>
    %cst_5 = arith.constant 0.000000e+00 : f32
    %6 = vector.broadcast %cst_5 : f32 to vector<16x128xf32>
    %7 = arith.maximumf %5, %6 : vector<16x128xf32>
    %c0_6 = arith.constant 0 : index
    %c0_7 = arith.constant 0 : index
    %c0_8 = arith.constant 0 : index
    %8 = vector.load %arg4[%c0_6, %c0_7, %c0_8] : memref<2x128x128xf32, #tpu.memory_space<vmem>>, vector<1x128x128xf32>
    %9 = vector.shape_cast %8 : vector<1x128x128xf32> to vector<128x128xf32>
    %cst_9 = arith.constant dense<0.000000e+00> : vector<16x128xf32>
    %10 = tpu.matmul %7, %9, %cst_9 {dimension_numbers = #tpu.dot_dimension_numbers<[1], [0], [0], [1], [0, 0, 1, 1], [], []>} : vector<16x128xf32>, vector<128x128xf32>, vector<16x128xf32> -> vector<16x128xf32>
    %c0_10 = arith.constant 0 : index
    %c0_11 = arith.constant 0 : index
    %c0_12 = arith.constant 0 : index
    %11 = vector.load %arg5[%c0_10, %c0_11, %c0_12] : memref<2x1x128xf32, #tpu.memory_space<vmem>>, vector<1x1x128xf32>
    %12 = vector.shape_cast %11 : vector<1x1x128xf32> to vector<1x128xf32>
    %13 = vector.broadcast %12 : vector<1x128xf32> to vector<16x128xf32>
    %14 = arith.addf %10, %13 : vector<16x128xf32>
    %cst_13 = arith.constant 0.000000e+00 : f32
    %15 = vector.broadcast %cst_13 : f32 to vector<16x128xf32>
    %16 = arith.maximumf %14, %15 : vector<16x128xf32>
    %c1 = arith.constant 1 : index
    %c0_14 = arith.constant 0 : index
    %c0_15 = arith.constant 0 : index
    %17 = vector.load %arg4[%c1, %c0_14, %c0_15] : memref<2x128x128xf32, #tpu.memory_space<vmem>>, vector<1x128x128xf32>
    %18 = vector.shape_cast %17 : vector<1x128x128xf32> to vector<128x128xf32>
    %cst_16 = arith.constant dense<0.000000e+00> : vector<16x128xf32>
    %19 = tpu.matmul %16, %18, %cst_16 {dimension_numbers = #tpu.dot_dimension_numbers<[1], [0], [0], [1], [0, 0, 1, 1], [], []>} : vector<16x128xf32>, vector<128x128xf32>, vector<16x128xf32> -> vector<16x128xf32>
    %c1_17 = arith.constant 1 : index
    %c0_18 = arith.constant 0 : index
    %c0_19 = arith.constant 0 : index
    %20 = vector.load %arg5[%c1_17, %c0_18, %c0_19] : memref<2x1x128xf32, #tpu.memory_space<vmem>>, vector<1x1x128xf32>
    %21 = vector.shape_cast %20 : vector<1x1x128xf32> to vector<1x128xf32>
    %22 = vector.broadcast %21 : vector<1x128xf32> to vector<16x128xf32>
    %23 = arith.addf %19, %22 : vector<16x128xf32>
    %cst_20 = arith.constant 0.000000e+00 : f32
    %24 = vector.broadcast %cst_20 : f32 to vector<16x128xf32>
    %25 = arith.maximumf %23, %24 : vector<16x128xf32>
    %c0_21 = arith.constant 0 : index
    %c0_22 = arith.constant 0 : index
    %26 = vector.load %arg6[%c0_21, %c0_22] : memref<128x128xf32, #tpu.memory_space<vmem>>, vector<128x128xf32>
    %cst_23 = arith.constant dense<0.000000e+00> : vector<16x128xf32>
    %27 = tpu.matmul %25, %26, %cst_23 {dimension_numbers = #tpu.dot_dimension_numbers<[1], [0], [0], [1], [0, 0, 1, 1], [], []>} : vector<16x128xf32>, vector<128x128xf32>, vector<16x128xf32> -> vector<16x128xf32>
    %c0_24 = arith.constant 0 : index
    %c0_25 = arith.constant 0 : index
    %28 = vector.load %arg7[%c0_24, %c0_25] : memref<1x128xf32, #tpu.memory_space<vmem>>, vector<1x128xf32>
    %29 = vector.broadcast %28 : vector<1x128xf32> to vector<16x128xf32>
    %30 = arith.addf %27, %29 : vector<16x128xf32>
    %cst_26 = arith.constant 0.000000e+00 : f32
    %31 = vector.broadcast %cst_26 : f32 to vector<16x128xf32>
    %32 = arith.subf %31, %30 : vector<16x128xf32>
    %33 = math.exp %32 : vector<16x128xf32>
    %cst_27 = arith.constant 1.000000e+00 : f32
    %34 = vector.broadcast %cst_27 : f32 to vector<16x128xf32>
    %35 = arith.addf %34, %33 : vector<16x128xf32>
    %cst_28 = arith.constant 1.000000e+00 : f32
    %36 = vector.broadcast %cst_28 : f32 to vector<16x128xf32>
    %37 = arith.divf %36, %35 : vector<16x128xf32>
    %c0_29 = arith.constant 0 : index
    %c0_30 = arith.constant 0 : index
    %38 = vector.load %arg8[%c0_29, %c0_30] : memref<16x128xf32, #tpu.memory_space<vmem>>, vector<16x128xf32>
    tpu.vector_store %arg8[%c0_29, %c0_30], %37 {strides = array<i32>} : memref<16x128xf32, #tpu.memory_space<vmem>>, vector<16x128xf32>,
    return
  }
  func.func @transform_0(%arg0: i32) -> (i32, i32) {
    %c0_i32 = arith.constant 0 : i32
    %c0_i32_0 = arith.constant 0 : i32
    return %arg0, %c0_i32 : i32, i32
  }
  func.func @transform_1(%arg0: i32) -> (i32, i32) {
    %c0_i32 = arith.constant 0 : i32
    %c0_i32_0 = arith.constant 0 : i32
    %c0_i32_1 = arith.constant 0 : i32
    return %c0_i32, %c0_i32_0 : i32, i32
  }
  func.func @transform_2(%arg0: i32) -> (i32, i32) {
    %c0_i32 = arith.constant 0 : i32
    %c0_i32_0 = arith.constant 0 : i32
    %c0_i32_1 = arith.constant 0 : i32
    return %c0_i32, %c0_i32_0 : i32, i32
  }
  func.func @transform_3(%arg0: i32) -> (i32, i32, i32) {
    %c0_i32 = arith.constant 0 : i32
    %c0_i32_0 = arith.constant 0 : i32
    %c0_i32_1 = arith.constant 0 : i32
    %c0_i32_2 = arith.constant 0 : i32
    return %c0_i32, %c0_i32_0, %c0_i32_1 : i32, i32, i32
  }
  func.func @transform_4(%arg0: i32) -> (i32, i32, i32) {
    %c0_i32 = arith.constant 0 : i32
    %c0_i32_0 = arith.constant 0 : i32
    %c0_i32_1 = arith.constant 0 : i32
    %c0_i32_2 = arith.constant 0 : i32
    return %c0_i32, %c0_i32_0, %c0_i32_1 : i32, i32, i32
  }
  func.func @transform_5(%arg0: i32) -> (i32, i32) {
    %c0_i32 = arith.constant 0 : i32
    %c0_i32_0 = arith.constant 0 : i32
    %c0_i32_1 = arith.constant 0 : i32
    return %c0_i32, %c0_i32_0 : i32, i32
  }
  func.func @transform_6(%arg0: i32) -> (i32, i32) {
    %c0_i32 = arith.constant 0 : i32
    %c0_i32_0 = arith.constant 0 : i32
    %c0_i32_1 = arith.constant 0 : i32
    return %c0_i32, %c0_i32_0 : i32, i32
  }
  func.func @transform_7(%arg0: i32) -> (i32, i32) {
    %c0_i32 = arith.constant 0 : i32
    %c0_i32_0 = arith.constant 0 : i32
    return %arg0, %c0_i32 : i32, i32
  }
}

module attributes {stable_mosaic.version = 11 : i64} {
  func.func @fused_mlp_kernel(%arg0: i32, %arg1: memref<16x128xf32, #tpu.memory_space<vmem>>, %arg2: memref<128x128xf32, #tpu.memory_space<vmem>>, %arg3: memref<1x128xf32, #tpu.memory_space<vmem>>, %arg4: memref<2x128x128xf32, #tpu.memory_space<vmem>>, %arg5: memref<2x1x128xf32, #tpu.memory_space<vmem>>, %arg6: memref<128x128xf32, #tpu.memory_space<vmem>>, %arg7: memref<1x128xf32, #tpu.memory_space<vmem>>, %arg8: memref<16x128xf32, #tpu.memory_space<vmem>>) attributes {dimension_semantics = [#tpu.dimension_semantics<parallel>], iteration_bounds = array<i64: 2>, scalar_prefetch = 0 : i64, scratch_operands = 0 : i64, tpu.core_type = #tpu.core_type<tc>, window_params = [{transform_indices = @transform_0, window_bounds = array<i64: 16, 128>}, {pipeline_mode = #tpu.pipeline_mode<synchronous>, transform_indices = @transform_1, window_bounds = array<i64: 128, 128>}, {pipeline_mode = #tpu.pipeline_mode<synchronous>, transform_indices = @transform_2, window_bounds = array<i64: 1, 128>}, {pipeline_mode = #tpu.pipeline_mode<synchronous>, transform_indices = @transform_3, window_bounds = array<i64: 2, 128, 128>}, {pipeline_mode = #tpu.pipeline_mode<synchronous>, transform_indices = @transform_4, window_bounds = array<i64: 2, 1, 128>}, {pipeline_mode = #tpu.pipeline_mode<synchronous>, transform_indices = @transform_5, window_bounds = array<i64: 128, 128>}, {pipeline_mode = #tpu.pipeline_mode<synchronous>, transform_indices = @transform_6, window_bounds = array<i64: 1, 128>}, {transform_indices = @transform_7, window_bounds = array<i64: 16, 128>}]} {
    %c0 = arith.constant 0 : index
    %c0_0 = arith.constant 0 : index
    %0 = vector.load %arg1[%c0, %c0_0] : memref<16x128xf32, #tpu.memory_space<vmem>>, vector<16x128xf32>
    %c0_1 = arith.constant 0 : index
    %c0_2 = arith.constant 0 : index
    %1 = vector.load %arg2[%c0_1, %c0_2] : memref<128x128xf32, #tpu.memory_space<vmem>>, vector<128x128xf32>
    %cst = arith.constant dense<0.000000e+00> : vector<16x128xf32>
    %2 = tpu.matmul %0, %1, %cst {dimension_numbers = #tpu.dot_dimension_numbers<[1], [0], [0], [1], [0, 0, 1, 1], [], []>} : vector<16x128xf32>, vector<128x128xf32>, vector<16x128xf32> -> vector<16x128xf32>
    %c0_3 = arith.constant 0 : index
    %c0_4 = arith.constant 0 : index
    %3 = vector.load %arg3[%c0_3, %c0_4] : memref<1x128xf32, #tpu.memory_space<vmem>>, vector<1x128xf32>
    %4 = vector.broadcast %3 : vector<1x128xf32> to vector<16x128xf32>
    %5 = arith.addf %2, %4 : vector<16x128xf32>
    %cst_5 = arith.constant 0.000000e+00 : f32
    %6 = vector.broadcast %cst_5 : f32 to vector<16x128xf32>
    %7 = arith.maximumf %5, %6 : vector<16x128xf32>
    %c0_6 = arith.constant 0 : index
    %c0_7 = arith.constant 0 : index
    %c0_8 = arith.constant 0 : index
    %8 = vector.load %arg4[%c0_6, %c0_7, %c0_8] : memref<2x128x128xf32, #tpu.memory_space<vmem>>, vector<1x128x128xf32>
    %9 = vector.shape_cast %8 : vector<1x128x128xf32> to vector<128x128xf32>
    %cst_9 = arith.constant dense<0.000000e+00> : vector<16x128xf32>
    %10 = tpu.matmul %7, %9, %cst_9 {dimension_numbers = #tpu.dot_dimension_numbers<[1], [0], [0], [1], [0, 0, 1, 1], [], []>} : vector<16x128xf32>, vector<128x128xf32>, vector<16x128xf32> -> vector<16x128xf32>
    %c0_10 = arith.constant 0 : index
    %c0_11 = arith.constant 0 : index
    %c0_12 = arith.constant 0 : index
    %11 = vector.load %arg5[%c0_10, %c0_11, %c0_12] : memref<2x1x128xf32, #tpu.memory_space<vmem>>, vector<1x1x128xf32>
    %12 = vector.shape_cast %11 : vector<1x1x128xf32> to vector<1x128xf32>
    %13 = vector.broadcast %12 : vector<1x128xf32> to vector<16x128xf32>
    %14 = arith.addf %10, %13 : vector<16x128xf32>
    %cst_13 = arith.constant 0.000000e+00 : f32
    %15 = vector.broadcast %cst_13 : f32 to vector<16x128xf32>
    %16 = arith.maximumf %14, %15 : vector<16x128xf32>
    %c1 = arith.constant 1 : index
    %c0_14 = arith.constant 0 : index
    %c0_15 = arith.constant 0 : index
    %17 = vector.load %arg4[%c1, %c0_14, %c0_15] : memref<2x128x128xf32, #tpu.memory_space<vmem>>, vector<1x128x128xf32>
    %18 = vector.shape_cast %17 : vector<1x128x128xf32> to vector<128x128xf32>
    %cst_16 = arith.constant dense<0.000000e+00> : vector<16x128xf32>
    %19 = tpu.matmul %16, %18, %cst_16 {dimension_numbers = #tpu.dot_dimension_numbers<[1], [0], [0], [1], [0, 0, 1, 1], [], []>} : vector<16x128xf32>, vector<128x128xf32>, vector<16x128xf32> -> vector<16x128xf32>
    %c1_17 = arith.constant 1 : index
    %c0_18 = arith.constant 0 : index
    %c0_19 = arith.constant 0 : index
    %20 = vector.load %arg5[%c1_17, %c0_18, %c0_19] : memref<2x1x128xf32, #tpu.memory_space<vmem>>, vector<1x1x128xf32>
    %21 = vector.shape_cast %20 : vector<1x1x128xf32> to vector<1x128xf32>
    %22 = vector.broadcast %21 : vector<1x128xf32> to vector<16x128xf32>
    %23 = arith.addf %19, %22 : vector<16x128xf32>
    %cst_20 = arith.constant 0.000000e+00 : f32
    %24 = vector.broadcast %cst_20 : f32 to vector<16x128xf32>
    %25 = arith.maximumf %23, %24 : vector<16x128xf32>
    %c0_21 = arith.constant 0 : index
    %c0_22 = arith.constant 0 : index
    %26 = vector.load %arg6[%c0_21, %c0_22] : memref<128x128xf32, #tpu.memory_space<vmem>>, vector<128x128xf32>
    %cst_23 = arith.constant dense<0.000000e+00> : vector<16x128xf32>
    %27 = tpu.matmul %25, %26, %cst_23 {dimension_numbers = #tpu.dot_dimension_numbers<[1], [0], [0], [1], [0, 0, 1, 1], [], []>} : vector<16x128xf32>, vector<128x128xf32>, vector<16x128xf32> -> vector<16x128xf32>
    %c0_24 = arith.constant 0 : index
    %c0_25 = arith.constant 0 : index
    %28 = vector.load %arg7[%c0_24, %c0_25] : memref<1x128xf32, #tpu.memory_space<vmem>>, vector<1x128xf32>
    %29 = vector.broadcast %28 : vector<1x128xf32> to vector<16x128xf32>
    %30 = arith.addf %27, %29 : vector<16x128xf32>
    %cst_26 = arith.constant 0.000000e+00 : f32
    %31 = vector.broadcast %cst_26 : f32 to vector<16x128xf32>
    %32 = arith.subf %31, %30 : vector<16x128xf32>
    %33 = math.exp %32 : vector<16x128xf32>
    %cst_27 = arith.constant 1.000000e+00 : f32
    %34 = vector.broadcast %cst_27 : f32 to vector<16x128xf32>
    %35 = arith.addf %34, %33 : vector<16x128xf32>
    %cst_28 = arith.constant 1.000000e+00 : f32
    %36 = vector.broadcast %cst_28 : f32 to vector<16x128xf32>
    %37 = arith.divf %36, %35 : vector<16x128xf32>
    %c0_29 = arith.constant 0 : index
    %c0_30 = arith.constant 0 : index
    %38 = vector.load %arg8[%c0_29, %c0_30] : memref<16x128xf32, #tpu.memory_space<vmem>>, vector<16x128xf32>
    tpu.vector_store %arg8[%c0_29, %c0_30], %37 {strides = array<i32>} : memref<16x128xf32, #tpu.memory_space<vmem>>, vector<16x128xf32>,
    return
  }
  func.func @transform_0(%arg0: i32) -> (i32, i32) {
    %c0_i32 = arith.constant 0 : i32
    %c0_i32_0 = arith.constant 0 : i32
    return %arg0, %c0_i32 : i32, i32
  }
  func.func @transform_1(%arg0: i32) -> (i32, i32) {
    %c0_i32 = arith.constant 0 : i32
    %c0_i32_0 = arith.constant 0 : i32
    %c0_i32_1 = arith.constant 0 : i32
    return %c0_i32, %c0_i32_0 : i32, i32
  }
  func.func @transform_2(%arg0: i32) -> (i32, i32) {
    %c0_i32 = arith.constant 0 : i32
    %c0_i32_0 = arith.constant 0 : i32
    %c0_i32_1 = arith.constant 0 : i32
    return %c0_i32, %c0_i32_0 : i32, i32
  }
  func.func @transform_3(%arg0: i32) -> (i32, i32, i32) {
    %c0_i32 = arith.constant 0 : i32
    %c0_i32_0 = arith.constant 0 : i32
    %c0_i32_1 = arith.constant 0 : i32
    %c0_i32_2 = arith.constant 0 : i32
    return %c0_i32, %c0_i32_0, %c0_i32_1 : i32, i32, i32
  }
  func.func @transform_4(%arg0: i32) -> (i32, i32, i32) {
    %c0_i32 = arith.constant 0 : i32
    %c0_i32_0 = arith.constant 0 : i32
    %c0_i32_1 = arith.constant 0 : i32
    %c0_i32_2 = arith.constant 0 : i32
    return %c0_i32, %c0_i32_0, %c0_i32_1 : i32, i32, i32
  }
  func.func @transform_5(%arg0: i32) -> (i32, i32) {
    %c0_i32 = arith.constant 0 : i32
    %c0_i32_0 = arith.constant 0 : i32
    %c0_i32_1 = arith.constant 0 : i32
    return %c0_i32, %c0_i32_0 : i32, i32
  }
  func.func @transform_6(%arg0: i32) -> (i32, i32) {
    %c0_i32 = arith.constant 0 : i32
    %c0_i32_0 = arith.constant 0 : i32
    %c0_i32_1 = arith.constant 0 : i32
    return %c0_i32, %c0_i32_0 : i32, i32
  }
  func.func @transform_7(%arg0: i32) -> (i32, i32) {
    %c0_i32 = arith.constant 0 : i32
    %c0_i32_0 = arith.constant 0 : i32
    return %arg0, %c0_i32 : i32, i32
  }
}

</mosaic_0001>

<llo_original>
// kernel: fused_mlp.1
$region0: #{fused_mlp.1}
  #allocation0 [shape = 'u32[]', space=smem, size = 0x4, offset = 0x4, fixed_abs, tag = 'smem constant byte address 0x4 - core index']
  #allocation1 [shape = 'u32[144,128]{1,0:T(1,128)}', space=vmem, size = 0x12000, scoped, tag = 'internal scratch']
  %s0 = inlined_call_operand.vmem [shape: f32[32,128], index: 0, kind: input, shape index: {}]
  %s1 = inlined_call_operand.vmem [shape: f32[128,128], index: 1, kind: input, shape index: {}]
  %s2 = inlined_call_operand.vmem [shape: f32[1,128], index: 2, kind: input, shape index: {}]
  %s3 = inlined_call_operand.hbm [shape: f32[2,128,128], index: 3, kind: input, shape index: {}]
  %s4 = inlined_call_operand.vmem [shape: f32[2,1,128], index: 4, kind: input, shape index: {}]
  %s5 = inlined_call_operand.hbm [shape: f32[128,128], index: 5, kind: input, shape index: {}]
  %s6 = inlined_call_operand.vmem [shape: f32[1,128], index: 6, kind: input, shape index: {}]
  %s7 = inlined_call_operand.vmem [shape: f32[32,128], index: 7, kind: output, shape index: {}]
  %s8 = sld [smem:[#allocation0]]
  $region69: #{fused_mlp.1} parent=0
    _
  %s10 = ssub.s32 1, %s8
  %s11 = scalar_select 0, %s10, %s8
  $region1: #{fused_mlp.1} parent=0
    #allocation2 [shape = 'u8[131072]{0}', space=vmem, size = 0x20000, scoped, tag = 'input window, operand 3, single buffered']
    #allocation3 [shape = 's32[2]{0}', space=sflag, size = 0x8, scoped, tag = 'scoped memory for fused_mlp.1']
    #allocation4 [shape = 'u8[65536]{0}', space=vmem, size = 0x10000, scoped, tag = 'input window, operand 5, single buffered']
    #allocation5 [shape = 's32[1]{0}', space=sflag, size = 0x4, scoped, tag = 'scoped memory for fused_mlp.1']
    %12 = vsyncpa [#allocation3], 0
    %13 = vsyncpa [#allocation5], 0
    loop: start=0, step=1, limit=4
    $region2: #{fused_mlp.1} parent=1 // loop_pre_header
      _
    $region3: #{fused_mlp.1} parent=1 // loop_header
      %s15 = sphi 0, %s19
      %p16 = scmp.ge.s32.totalorder %s15, 4
      %s25 = sphi 0, %s27
      %s28 = sphi 0, %s25
      %s29 = sphi 0, %s28
      %s45 = sphi 0, %s29
      %s49 = sphi 0, %s49
      %s51 = sphi 0, %s49
      %s52 = sphi 0, %s51
      %s66 = sphi 0, %s52
      %s70 = sphi 0, %s70
      %s72 = sphi 0, %s70
      %s73 = sphi 0, %s72
      %s87 = sphi 0, %s73
      %s91 = sphi 0, %s91
      %s93 = sphi 0, %s91
      %s94 = sphi 0, %s93
      %s108 = sphi 0, %s94
      %s112 = sphi 0, %s112
      %s114 = sphi 0, %s112
      %s115 = sphi 0, %s114
      %s129 = sphi 0, %s115
      %s133 = sphi 0, %s133
      %s135 = sphi 0, %s133
      %s136 = sphi 0, %s135
      %s150 = sphi 0, %s136
      %s154 = sphi 0, %s154
      %s156 = sphi 0, %s154
      %s157 = sphi 0, %s156
      %s171 = sphi 0, %s157
      %s177 = sphi 0, %s179
      %s180 = sphi 0, %s177
      %s181 = sphi 0, %s180
      %s197 = sphi 0, %s181
    $region4: #{fused_mlp.1} parent=1 // loop_header_branch
      %18 = sbr.rel (%p16) target = $region8
    $region5: #{fused_mlp.1} parent=1 // loop_body
      %s20 = ssub.s32 %s15, 1
      %s21 = ssub.s32 %s15, 2
      %s22 = sadd.s32 %s15, 1
      %s23 = ssub.s32 %s15, %s22
      %p24 = scmp.eq.s32.totalorder %s23, 0
      %s26 = sadd.s32 %s25, 1
      %s27 = scalar_select %p24, %s25, %s26
      %p30 = pneg %p24
      %p31 = scmp.eq.s32.totalorder %s15, 1
      %p32 = por %p30, %p31
      %p33 = scmp.ne.s32.totalorder %s25, %s28
      %p34 = scmp.eq.s32.totalorder %s15, 0
      %p35 = por %p33, %p34
      %p36 = scmp.ne.s32.totalorder %s25, %s28
      %p37 = scmp.eq.s32.totalorder %s20, 1
      %p38 = por %p36, %p37
      %p39 = scmp.ne.s32.totalorder %s28, %s29
      %p40 = scmp.eq.s32.totalorder %s20, 0
      %p41 = por %p39, %p40
      %p42 = scmp.ne.s32.totalorder %s28, %s29
      %p43 = scmp.eq.s32.totalorder %s21, 1
      %p44 = por %p42, %p43
      %p46 = scmp.ne.s32.totalorder %s29, %s45
      %p47 = scmp.eq.s32.totalorder %s21, 0
      %p48 = por %p46, %p47
      %s50 = sadd.s32 %s49, 1
      %p53 = scmp.eq.s32.totalorder %s15, 1
      %p54 = scmp.ne.s32.totalorder %s49, %s51
      %p55 = scmp.eq.s32.totalorder %s15, 0
      %p56 = por %p54, %p55
      %p57 = scmp.ne.s32.totalorder %s49, %s51
      %p58 = scmp.eq.s32.totalorder %s20, 1
      %p59 = por %p57, %p58
      %p60 = scmp.ne.s32.totalorder %s51, %s52
      %p61 = scmp.eq.s32.totalorder %s20, 0
      %p62 = por %p60, %p61
      %p63 = scmp.ne.s32.totalorder %s51, %s52
      %p64 = scmp.eq.s32.totalorder %s21, 1
      %p65 = por %p63, %p64
      %p67 = scmp.ne.s32.totalorder %s52, %s66
      %p68 = scmp.eq.s32.totalorder %s21, 0
      %p69 = por %p67, %p68
      %s71 = sadd.s32 %s70, 1
      %p74 = scmp.eq.s32.totalorder %s15, 1
      %p75 = scmp.ne.s32.totalorder %s70, %s72
      %p76 = scmp.eq.s32.totalorder %s15, 0
      %p77 = por %p75, %p76
      %p78 = scmp.ne.s32.totalorder %s70, %s72
      %p79 = scmp.eq.s32.totalorder %s20, 1
      %p80 = por %p78, %p79
      %p81 = scmp.ne.s32.totalorder %s72, %s73
      %p82 = scmp.eq.s32.totalorder %s20, 0
      %p83 = por %p81, %p82
      %p84 = scmp.ne.s32.totalorder %s72, %s73
      %p85 = scmp.eq.s32.totalorder %s21, 1
      %p86 = por %p84, %p85
      %p88 = scmp.ne.s32.totalorder %s73, %s87
      %p89 = scmp.eq.s32.totalorder %s21, 0
      %p90 = por %p88, %p89
      %s92 = sadd.s32 %s91, 1
      %p95 = scmp.eq.s32.totalorder %s15, 1
      %p96 = scmp.ne.s32.totalorder %s91, %s93
      %p97 = scmp.eq.s32.totalorder %s15, 0
      %p98 = por %p96, %p97
      %p99 = scmp.ne.s32.totalorder %s91, %s93
      %p100 = scmp.eq.s32.totalorder %s20, 1
      %p101 = por %p99, %p100
      %p102 = scmp.ne.s32.totalorder %s93, %s94
      %p103 = scmp.eq.s32.totalorder %s20, 0
      %p104 = por %p102, %p103
      %p105 = scmp.ne.s32.totalorder %s93, %s94
      %p106 = scmp.eq.s32.totalorder %s21, 1
      %p107 = por %p105, %p106
      %p109 = scmp.ne.s32.totalorder %s94, %s108
      %p110 = scmp.eq.s32.totalorder %s21, 0
      %p111 = por %p109, %p110
      %s113 = sadd.s32 %s112, 1
      %p116 = scmp.eq.s32.totalorder %s15, 1
      %p117 = scmp.ne.s32.totalorder %s112, %s114
      %p118 = scmp.eq.s32.totalorder %s15, 0
      %p119 = por %p117, %p118
      %p120 = scmp.ne.s32.totalorder %s112, %s114
      %p121 = scmp.eq.s32.totalorder %s20, 1
      %p122 = por %p120, %p121
      %p123 = scmp.ne.s32.totalorder %s114, %s115
      %p124 = scmp.eq.s32.totalorder %s20, 0
      %p125 = por %p123, %p124
      %p126 = scmp.ne.s32.totalorder %s114, %s115
      %p127 = scmp.eq.s32.totalorder %s21, 1
      %p128 = por %p126, %p127
      %p130 = scmp.ne.s32.totalorder %s115, %s129
      %p131 = scmp.eq.s32.totalorder %s21, 0
      %p132 = por %p130, %p131
      %s134 = sadd.s32 %s133, 1
      %p137 = scmp.eq.s32.totalorder %s15, 1
      %p138 = scmp.ne.s32.totalorder %s133, %s135
      %p139 = scmp.eq.s32.totalorder %s15, 0
      %p140 = por %p138, %p139
      %p141 = scmp.ne.s32.totalorder %s133, %s135
      %p142 = scmp.eq.s32.totalorder %s20, 1
      %p143 = por %p141, %p142
      %p144 = scmp.ne.s32.totalorder %s135, %s136
      %p145 = scmp.eq.s32.totalorder %s20, 0
      %p146 = por %p144, %p145
      %p147 = scmp.ne.s32.totalorder %s135, %s136
      %p148 = scmp.eq.s32.totalorder %s21, 1
      %p149 = por %p147, %p148
      %p151 = scmp.ne.s32.totalorder %s136, %s150
      %p152 = scmp.eq.s32.totalorder %s21, 0
      %p153 = por %p151, %p152
      %s155 = sadd.s32 %s154, 1
      %p158 = scmp.eq.s32.totalorder %s15, 1
      %p159 = scmp.ne.s32.totalorder %s154, %s156
      %p160 = scmp.eq.s32.totalorder %s15, 0
      %p161 = por %p159, %p160
      %p162 = scmp.ne.s32.totalorder %s154, %s156
      %p163 = scmp.eq.s32.totalorder %s20, 1
      %p164 = por %p162, %p163
      %p165 = scmp.ne.s32.totalorder %s156, %s157
      %p166 = scmp.eq.s32.totalorder %s20, 0
      %p167 = por %p165, %p166
      %p168 = scmp.ne.s32.totalorder %s156, %s157
      %p169 = scmp.eq.s32.totalorder %s21, 1
      %p170 = por %p168, %p169
      %p172 = scmp.ne.s32.totalorder %s157, %s171
      %p173 = scmp.eq.s32.totalorder %s21, 0
      %p174 = por %p172, %p173
      %s175 = ssub.s32 %s15, %s22
      %p176 = scmp.eq.s32.totalorder %s175, 0
      %s178 = sadd.s32 %s177, 1
      %s179 = scalar_select %p176, %s177, %s178
      %p182 = pneg %p176
      %p183 = scmp.eq.s32.totalorder %s15, 1
      %p184 = por %p182, %p183
      %p185 = scmp.ne.s32.totalorder %s177, %s180
      %p186 = scmp.eq.s32.totalorder %s15, 0
      %p187 = por %p185, %p186
      %p188 = scmp.ne.s32.totalorder %s177, %s180
      %p189 = scmp.eq.s32.totalorder %s20, 1
      %p190 = por %p188, %p189
      %p191 = scmp.ne.s32.totalorder %s180, %s181
      %p192 = scmp.eq.s32.totalorder %s20, 0
      %p193 = por %p191, %p192
      %p194 = scmp.ne.s32.totalorder %s180, %s181
      %p195 = scmp.eq.s32.totalorder %s21, 1
      %p196 = por %p194, %p195
      %p198 = scmp.ne.s32.totalorder %s181, %s197
      %p199 = scmp.eq.s32.totalorder %s21, 0
      %p200 = por %p198, %p199
      %p201 = scmp.le.s32.totalorder 1, %s15
      %p202 = scmp.lt.s32.totalorder %s15, 3
      %p203 = pnand %p201, %p202
      %p204 = pneg %p203
      // Predicated region
      $region9: #{fused_mlp.1} parent=5 // pred_check
        _
      $region10: #{fused_mlp.1} parent=5 // pred_check_branch
        %206 = sbr.rel (%p203) target = $region12
      $region11: #{fused_mlp.1} parent=5 // pred_region
        %s207 = ssub.s32 %s15, 1
        // Predicated region
        $region13: #{fused_mlp.1} parent=11 // pred_check
          %p208 = pneg %p62
        $region14: #{fused_mlp.1} parent=11 // pred_check_branch
          %210 = sbr.rel (%p208) target = $region16
        $region15: #{fused_mlp.1} parent=11 // pred_region
          _
        $region16: #{fused_mlp.1} parent=11 // pred_fallthru
          _
        // Predicated region
        $region17: #{fused_mlp.1} parent=11 // pred_check
          %p211 = pneg %p83
        $region18: #{fused_mlp.1} parent=11 // pred_check_branch
          %213 = sbr.rel (%p211) target = $region20
        $region19: #{fused_mlp.1} parent=11 // pred_region
          _
        $region20: #{fused_mlp.1} parent=11 // pred_fallthru
          _
        // Predicated region
        $region21: #{fused_mlp.1} parent=11 // pred_check
          %p214 = pneg %p104
        $region22: #{fused_mlp.1} parent=11 // pred_check_branch
          %216 = sbr.rel (%p214) target = $region24
        $region23: #{fused_mlp.1} parent=11 // pred_region
          %s218 = ssub.s32 4096, 4096
          %219 = vsyncadd [#allocation3], %s218
          %s220 = sshll.u32 [#allocation2], 4
          %s221 = int_to_ptr.vmem [resolvable:$true] %s220
          %226 = dma.hbm_to_vmem [thread:$0]  %s3, 4096, %s221, [#allocation3], 128, 128, 8
        $region24: #{fused_mlp.1} parent=11 // pred_fallthru
          _
        // Predicated region
        $region25: #{fused_mlp.1} parent=11 // pred_check
          %p227 = pneg %p125
        $region26: #{fused_mlp.1} parent=11 // pred_check_branch
          %229 = sbr.rel (%p227) target = $region28
        $region27: #{fused_mlp.1} parent=11 // pred_region
          _
        $region28: #{fused_mlp.1} parent=11 // pred_fallthru
          _
        // Predicated region
        $region29: #{fused_mlp.1} parent=11 // pred_check
          %p230 = pneg %p146
        $region30: #{fused_mlp.1} parent=11 // pred_check_branch
          %232 = sbr.rel (%p230) target = $region32
        $region31: #{fused_mlp.1} parent=11 // pred_region
          %s234 = ssub.s32 2048, 2048
          %235 = vsyncadd [#allocation5], %s234
          %s236 = sshll.u32 [#allocation4], 4
          %s237 = int_to_ptr.vmem [resolvable:$true] %s236
          %242 = dma.hbm_to_vmem [thread:$0]  %s5, 2048, %s237, [#allocation5], 128, 128, 8
        $region32: #{fused_mlp.1} parent=11 // pred_fallthru
          _
        // Predicated region
        $region33: #{fused_mlp.1} parent=11 // pred_check
          %p243 = pneg %p167
        $region34: #{fused_mlp.1} parent=11 // pred_check_branch
          %245 = sbr.rel (%p243) target = $region36
        $region35: #{fused_mlp.1} parent=11 // pred_region
          _
        $region36: #{fused_mlp.1} parent=11 // pred_fallthru
          _
      $region12: #{fused_mlp.1} parent=5 // pred_fallthru
        _
      %p246 = scmp.lt.s32.totalorder %s15, 2
      // Predicated region
      $region37: #{fused_mlp.1} parent=5 // pred_check
        %p247 = pneg %p246
      $region38: #{fused_mlp.1} parent=5 // pred_check_branch
        %249 = sbr.rel (%p247) target = $region40
      $region39: #{fused_mlp.1} parent=5 // pred_region
        // Predicated region
        $region41: #{fused_mlp.1} parent=39 // pred_check
          %p250 = pneg %p35
        $region42: #{fused_mlp.1} parent=39 // pred_check_branch
          %252 = sbr.rel (%p250) target = $region44
        $region43: #{fused_mlp.1} parent=39 // pred_region
          %s253 = smul.u32 2, %s15
          %p254 = scmp.lt.s32.totalorder %s253, 3
          %s255 = scalar_select %p254, %s253, 3
          %s256 = smul.addr %s255, 8
          %s257 = scalar_lea.vmem %s0, %s256
          %s258 = smul.u32 2, %s15
        $region44: #{fused_mlp.1} parent=39 // pred_fallthru
          _
      $region40: #{fused_mlp.1} parent=5 // pred_fallthru
        _
      %p259 = scmp.le.s32.totalorder 1, %s15
      %p260 = scmp.lt.s32.totalorder %s15, 3
      %p261 = pnand %p259, %p260
      %p262 = pneg %p261
      // Predicated region
      $region45: #{fused_mlp.1} parent=5 // pred_check
        _
      $region46: #{fused_mlp.1} parent=5 // pred_check_branch
        %264 = sbr.rel (%p261) target = $region48
      $region47: #{fused_mlp.1} parent=5 // pred_region
        %s265 = ssub.s32 %s15, 1
        // Predicated region
        $region49: #{fused_mlp.1} parent=47 // pred_check
          %p266 = pneg %p104
        $region50: #{fused_mlp.1} parent=47 // pred_check_branch
          %268 = sbr.rel (%p266) target = $region52
        $region51: #{fused_mlp.1} parent=47 // pred_region
          %269 = dma.done [#allocation3], 4096
        $region52: #{fused_mlp.1} parent=47 // pred_fallthru
          _
        // Predicated region
        $region53: #{fused_mlp.1} parent=47 // pred_check
          %p270 = pneg %p146
        $region54: #{fused_mlp.1} parent=47 // pred_check_branch
          %272 = sbr.rel (%p270) target = $region56
        $region55: #{fused_mlp.1} parent=47 // pred_region
          %273 = dma.done [#allocation5], 2048
        $region56: #{fused_mlp.1} parent=47 // pred_fallthru
          _
        %s274 = smul.u32 2, %s20
        %p275 = scmp.lt.s32.totalorder %s274, 3
        %s276 = scalar_select %p275, %s274, 3
        %s277 = smul.addr %s276, 8
        %s278 = scalar_lea.vmem %s0, %s277
        %p279 = pneg %p41
        %p280 = pneg %p38
        %p281 = pneg %p62
        %p282 = pneg %p59
        %p283 = pneg %p83
        %p284 = pneg %p80
        %p285 = pneg %p104
        %p286 = pneg %p101
        %p287 = pneg %p125
        %p288 = pneg %p122
        %p289 = pneg %p146
        %p290 = pneg %p143
        %p291 = pneg %p167
        %p292 = pneg %p164
        %p293 = pneg %p193
        %p294 = pneg %p190
        %s295 = smul.u32 2, %s20
        %p296 = scmp.lt.s32.totalorder %s295, 3
        %s297 = scalar_select %p296, %s295, 3
        %s298 = smul.addr %s297, 8
        %s299 = scalar_lea.vmem %s7, %s298
        %s300 = smul.u32 2, %s20
        %p301 = scmp.lt.s32.totalorder %s300, 3
        %s302 = scalar_select %p301, %s300, 3
        %s303 = smul.addr %s302, 8
        %s304 = scalar_lea.vmem %s0, %s303
        %s305 = smul.u32 2, %s20
        %s306 = smul.u32 2, %s20
        %p307 = scmp.lt.s32.totalorder %s306, 3
        %s308 = scalar_select %p307, %s306, 3
        %s309 = smul.addr %s308, 8
        %s310 = scalar_lea.vmem %s7, %s309
        %s311 = smul.u32 2, %s20
        %v312 = vld [vmem:[%s304] sm:$0xff]
        %v313 = vld [vmem:[%s304 + $0x8] sm:$0xff]
        %v314 = vld [vmem:[%s1] sm:$0xff]
        %v315 = vld [vmem:[%s1 + $0x8] sm:$0xff]
        %v316 = vld [vmem:[%s1 + $0x10] sm:$0xff]
        %v317 = vld [vmem:[%s1 + $0x18] sm:$0xff]
        %v318 = vld [vmem:[%s1 + $0x20] sm:$0xff]
        %v319 = vld [vmem:[%s1 + $0x28] sm:$0xff]
        %v320 = vld [vmem:[%s1 + $0x30] sm:$0xff]
        %v321 = vld [vmem:[%s1 + $0x38] sm:$0xff]
        %v322 = vld [vmem:[%s1 + $0x40] sm:$0xff]
        %v323 = vld [vmem:[%s1 + $0x48] sm:$0xff]
        %v324 = vld [vmem:[%s1 + $0x50] sm:$0xff]
        %v325 = vld [vmem:[%s1 + $0x58] sm:$0xff]
        %v326 = vld [vmem:[%s1 + $0x60] sm:$0xff]
        %v327 = vld [vmem:[%s1 + $0x68] sm:$0xff]
        %v328 = vld [vmem:[%s1 + $0x70] sm:$0xff]
        %v329 = vld [vmem:[%s1 + $0x78] sm:$0xff]
        %v330 = vld [vmem:[%s2] sm:$0x1]
        %v332 = vlaneseq
        %v333 = vshrl.u32 %v332, 7
        %v334 = vsub.s32 0, %v333
        %v335 = vrot.slane %v330, %v334
        %337 = vmatprep.subr.mxu0 0.0
        %338 = vmatpush1.msra.mxu0 %v329
        %339 = vmatprep.subr.mxu0 0.0
        %340 = vmatpush1.msra.mxu0 %v328
        %341 = vmatprep.subr.mxu0 0.0
        %342 = vmatpush1.msra.mxu0 %v327
        %343 = vmatprep.subr.mxu0 0.0
        %344 = vmatpush1.msra.mxu0 %v326
        %345 = vmatprep.subr.mxu0 0.0
        %346 = vmatpush1.msra.mxu0 %v325
        %347 = vmatprep.subr.mxu0 0.0
        %348 = vmatpush1.msra.mxu0 %v324
        %349 = vmatprep.subr.mxu0 0.0
        %350 = vmatpush1.msra.mxu0 %v323
        %351 = vmatprep.subr.mxu0 0.0
        %352 = vmatpush1.msra.mxu0 %v322
        %353 = vmatprep.subr.mxu0 0.0
        %354 = vmatpush1.msra.mxu0 %v321
        %355 = vmatprep.subr.mxu0 0.0
        %356 = vmatpush1.msra.mxu0 %v320
        %357 = vmatprep.subr.mxu0 0.0
        %358 = vmatpush1.msra.mxu0 %v319
        %359 = vmatprep.subr.mxu0 0.0
        %360 = vmatpush1.msra.mxu0 %v318
        %361 = vmatprep.subr.mxu0 0.0
        %362 = vmatpush1.msra.mxu0 %v317
        %363 = vmatprep.subr.mxu0 0.0
        %364 = vmatpush1.msra.mxu0 %v316
        %365 = vmatprep.subr.mxu0 0.0
        %366 = vmatpush1.msra.mxu0 %v315
        %367 = vmatprep.subr.mxu0 0.0
        %368 = vmatpush1.msra.mxu0 %v314
        %369 = vmatprep.subr.mxu0 0.0
        %370 = vmatpush2.msra.mxu0 0.0
        %371 = vmatprep.subr.mxu0 0.0
        %372 = vmatpush2.msra.mxu0 0.0
        %373 = vmatprep.subr.mxu0 0.0
        %374 = vmatpush2.msra.mxu0 0.0
        %375 = vmatprep.subr.mxu0 0.0
        %376 = vmatpush2.msra.mxu0 0.0
        %377 = vmatprep.subr.mxu0 0.0
        %378 = vmatpush2.msra.mxu0 0.0
        %379 = vmatprep.subr.mxu0 0.0
        %380 = vmatpush2.msra.mxu0 0.0
        %381 = vmatprep.subr.mxu0 0.0
        %382 = vmatpush2.msra.mxu0 0.0
        %383 = vmatprep.subr.mxu0 0.0
        %384 = vmatpush2.msra.mxu0 0.0
        %385 = vmatprep.subr.mxu0 0.0
        %386 = vmatpush2.msra.mxu0 0.0
        %387 = vmatprep.subr.mxu0 0.0
        %388 = vmatpush2.msra.mxu0 0.0
        %389 = vmatprep.subr.mxu0 0.0
        %390 = vmatpush2.msra.mxu0 0.0
        %391 = vmatprep.subr.mxu0 0.0
        %392 = vmatpush2.msra.mxu0 0.0
        %393 = vmatprep.subr.mxu0 0.0
        %394 = vmatpush2.msra.mxu0 0.0
        %395 = vmatprep.subr.mxu0 0.0
        %396 = vmatpush2.msra.mxu0 0.0
        %397 = vmatprep.subr.mxu0 0.0
        %398 = vmatpush2.msra.mxu0 0.0
        %399 = vmatprep.subr.mxu0 0.0
        %400 = vmatpush2.msra.mxu0 0.0
        %401 = vmatprep.mubr.f32.mxu0 0.0
        %402 = vmatmul.mubr.f32.gmra.mxu0 %v312
        %v403 = vpop.f32.mrf.mxu0
        %v404 = vadd.f32 %v335, %v403
        %v405 = vpop.f32.mrf.mxu0
        %406 = vmatprep.mubr.f32.mxu0 0.0
        %407 = vmatmul.mubr.f32.gmra.mxu0 %v313
        %v408 = vpop.f32.mrf.mxu0
        %v409 = vadd.f32 %v335, %v408
        %v410 = vpop.f32.mrf.mxu0
        %411 = vdwg.mxu0
        %v412 = vmax.f32 %v404, 0.0
        %v413 = vmax.f32 %v409, 0.0
        %v414 = vld [vmem:[#allocation2] sm:$0xff]
        %v415 = vld [vmem:[#allocation2 + $0x8] sm:$0xff]
        %v416 = vld [vmem:[#allocation2 + $0x10] sm:$0xff]
        %v417 = vld [vmem:[#allocation2 + $0x18] sm:$0xff]
        %v418 = vld [vmem:[#allocation2 + $0x20] sm:$0xff]
        %v419 = vld [vmem:[#allocation2 + $0x28] sm:$0xff]
        %v420 = vld [vmem:[#allocation2 + $0x30] sm:$0xff]
        %v421 = vld [vmem:[#allocation2 + $0x38] sm:$0xff]
        %v422 = vld [vmem:[#allocation2 + $0x40] sm:$0xff]
        %v423 = vld [vmem:[#allocation2 + $0x48] sm:$0xff]
        %v424 = vld [vmem:[#allocation2 + $0x50] sm:$0xff]
        %v425 = vld [vmem:[#allocation2 + $0x58] sm:$0xff]
        %v426 = vld [vmem:[#allocation2 + $0x60] sm:$0xff]
        %v427 = vld [vmem:[#allocation2 + $0x68] sm:$0xff]
        %v428 = vld [vmem:[#allocation2 + $0x70] sm:$0xff]
        %v429 = vld [vmem:[#allocation2 + $0x78] sm:$0xff]
        %v430 = vld [vmem:[%s4] sm:$0x1]
        %v432 = vlaneseq
        %v433 = vshrl.u32 %v432, 7
        %v434 = vsub.s32 0, %v433
        %v435 = vrot.slane %v430, %v434
        %437 = vmatprep.subr.mxu0 0.0
        %438 = vmatpush1.msra.mxu0 %v429
        %439 = vmatprep.subr.mxu0 0.0
        %440 = vmatpush1.msra.mxu0 %v428
        %441 = vmatprep.subr.mxu0 0.0
        %442 = vmatpush1.msra.mxu0 %v427
        %443 = vmatprep.subr.mxu0 0.0
        %444 = vmatpush1.msra.mxu0 %v426
        %445 = vmatprep.subr.mxu0 0.0
        %446 = vmatpush1.msra.mxu0 %v425
        %447 = vmatprep.subr.mxu0 0.0
        %448 = vmatpush1.msra.mxu0 %v424
        %449 = vmatprep.subr.mxu0 0.0
        %450 = vmatpush1.msra.mxu0 %v423
        %451 = vmatprep.subr.mxu0 0.0
        %452 = vmatpush1.msra.mxu0 %v422
        %453 = vmatprep.subr.mxu0 0.0
        %454 = vmatpush1.msra.mxu0 %v421
        %455 = vmatprep.subr.mxu0 0.0
        %456 = vmatpush1.msra.mxu0 %v420
        %457 = vmatprep.subr.mxu0 0.0
        %458 = vmatpush1.msra.mxu0 %v419
        %459 = vmatprep.subr.mxu0 0.0
        %460 = vmatpush1.msra.mxu0 %v418
        %461 = vmatprep.subr.mxu0 0.0
        %462 = vmatpush1.msra.mxu0 %v417
        %463 = vmatprep.subr.mxu0 0.0
        %464 = vmatpush1.msra.mxu0 %v416
        %465 = vmatprep.subr.mxu0 0.0
        %466 = vmatpush1.msra.mxu0 %v415
        %467 = vmatprep.subr.mxu0 0.0
        %468 = vmatpush1.msra.mxu0 %v414
        %469 = vmatprep.subr.mxu0 0.0
        %470 = vmatpush2.msra.mxu0 0.0
        %471 = vmatprep.subr.mxu0 0.0
        %472 = vmatpush2.msra.mxu0 0.0
        %473 = vmatprep.subr.mxu0 0.0
        %474 = vmatpush2.msra.mxu0 0.0
        %475 = vmatprep.subr.mxu0 0.0
        %476 = vmatpush2.msra.mxu0 0.0
        %477 = vmatprep.subr.mxu0 0.0
        %478 = vmatpush2.msra.mxu0 0.0
        %479 = vmatprep.subr.mxu0 0.0
        %480 = vmatpush2.msra.mxu0 0.0
        %481 = vmatprep.subr.mxu0 0.0
        %482 = vmatpush2.msra.mxu0 0.0
        %483 = vmatprep.subr.mxu0 0.0
        %484 = vmatpush2.msra.mxu0 0.0
        %485 = vmatprep.subr.mxu0 0.0
        %486 = vmatpush2.msra.mxu0 0.0
        %487 = vmatprep.subr.mxu0 0.0
        %488 = vmatpush2.msra.mxu0 0.0
        %489 = vmatprep.subr.mxu0 0.0
        %490 = vmatpush2.msra.mxu0 0.0
        %491 = vmatprep.subr.mxu0 0.0
        %492 = vmatpush2.msra.mxu0 0.0
        %493 = vmatprep.subr.mxu0 0.0
        %494 = vmatpush2.msra.mxu0 0.0
        %495 = vmatprep.subr.mxu0 0.0
        %496 = vmatpush2.msra.mxu0 0.0
        %497 = vmatprep.subr.mxu0 0.0
        %498 = vmatpush2.msra.mxu0 0.0
        %499 = vmatprep.subr.mxu0 0.0
        %500 = vmatpush2.msra.mxu0 0.0
        %501 = vmatprep.mubr.f32.mxu0 0.0
        %502 = vmatmul.mubr.f32.gmra.mxu0 %v412
        %v503 = vpop.f32.mrf.mxu0
        %v504 = vadd.f32 %v435, %v503
        %v505 = vpop.f32.mrf.mxu0
        %506 = vmatprep.mubr.f32.mxu0 0.0
        %507 = vmatmul.mubr.f32.gmra.mxu0 %v413
        %v508 = vpop.f32.mrf.mxu0
        %v509 = vadd.f32 %v435, %v508
        %v510 = vpop.f32.mrf.mxu0
        %511 = vdwg.mxu0
        %v512 = vmax.f32 %v504, 0.0
        %v513 = vmax.f32 %v509, 0.0
        %s514 = scalar_lea.vmem [#allocation2], 128
        %v515 = vld [vmem:[%s514] sm:$0xff]
        %v516 = vld [vmem:[%s514 + $0x8] sm:$0xff]
        %v517 = vld [vmem:[%s514 + $0x10] sm:$0xff]
        %v518 = vld [vmem:[%s514 + $0x18] sm:$0xff]
        %v519 = vld [vmem:[%s514 + $0x20] sm:$0xff]
        %v520 = vld [vmem:[%s514 + $0x28] sm:$0xff]
        %v521 = vld [vmem:[%s514 + $0x30] sm:$0xff]
        %v522 = vld [vmem:[%s514 + $0x38] sm:$0xff]
        %v523 = vld [vmem:[%s514 + $0x40] sm:$0xff]
        %v524 = vld [vmem:[%s514 + $0x48] sm:$0xff]
        %v525 = vld [vmem:[%s514 + $0x50] sm:$0xff]
        %v526 = vld [vmem:[%s514 + $0x58] sm:$0xff]
        %v527 = vld [vmem:[%s514 + $0x60] sm:$0xff]
        %v528 = vld [vmem:[%s514 + $0x68] sm:$0xff]
        %v529 = vld [vmem:[%s514 + $0x70] sm:$0xff]
        %v530 = vld [vmem:[%s514 + $0x78] sm:$0xff]
        %s531 = scalar_lea.vmem %s4, 1
        %v532 = vld [vmem:[%s531] sm:$0x1]
        %v534 = vlaneseq
        %v535 = vshrl.u32 %v534, 7
        %v536 = vsub.s32 0, %v535
        %v537 = vrot.slane %v532, %v536
        %539 = vmatprep.subr.mxu0 0.0
        %540 = vmatpush1.msra.mxu0 %v530
        %541 = vmatprep.subr.mxu0 0.0
        %542 = vmatpush1.msra.mxu0 %v529
        %543 = vmatprep.subr.mxu0 0.0
        %544 = vmatpush1.msra.mxu0 %v528
        %545 = vmatprep.subr.mxu0 0.0
        %546 = vmatpush1.msra.mxu0 %v527
        %547 = vmatprep.subr.mxu0 0.0
        %548 = vmatpush1.msra.mxu0 %v526
        %549 = vmatprep.subr.mxu0 0.0
        %550 = vmatpush1.msra.mxu0 %v525
        %551 = vmatprep.subr.mxu0 0.0
        %552 = vmatpush1.msra.mxu0 %v524
        %553 = vmatprep.subr.mxu0 0.0
        %554 = vmatpush1.msra.mxu0 %v523
        %555 = vmatprep.subr.mxu0 0.0
        %556 = vmatpush1.msra.mxu0 %v522
        %557 = vmatprep.subr.mxu0 0.0
        %558 = vmatpush1.msra.mxu0 %v521
        %559 = vmatprep.subr.mxu0 0.0
        %560 = vmatpush1.msra.mxu0 %v520
        %561 = vmatprep.subr.mxu0 0.0
        %562 = vmatpush1.msra.mxu0 %v519
        %563 = vmatprep.subr.mxu0 0.0
        %564 = vmatpush1.msra.mxu0 %v518
        %565 = vmatprep.subr.mxu0 0.0
        %566 = vmatpush1.msra.mxu0 %v517
        %567 = vmatprep.subr.mxu0 0.0
        %568 = vmatpush1.msra.mxu0 %v516
        %569 = vmatprep.subr.mxu0 0.0
        %570 = vmatpush1.msra.mxu0 %v515
        %571 = vmatprep.subr.mxu0 0.0
        %572 = vmatpush2.msra.mxu0 0.0
        %573 = vmatprep.subr.mxu0 0.0
        %574 = vmatpush2.msra.mxu0 0.0
        %575 = vmatprep.subr.mxu0 0.0
        %576 = vmatpush2.msra.mxu0 0.0
        %577 = vmatprep.subr.mxu0 0.0
        %578 = vmatpush2.msra.mxu0 0.0
        %579 = vmatprep.subr.mxu0 0.0
        %580 = vmatpush2.msra.mxu0 0.0
        %581 = vmatprep.subr.mxu0 0.0
        %582 = vmatpush2.msra.mxu0 0.0
        %583 = vmatprep.subr.mxu0 0.0
        %584 = vmatpush2.msra.mxu0 0.0
        %585 = vmatprep.subr.mxu0 0.0
        %586 = vmatpush2.msra.mxu0 0.0
        %587 = vmatprep.subr.mxu0 0.0
        %588 = vmatpush2.msra.mxu0 0.0
        %589 = vmatprep.subr.mxu0 0.0
        %590 = vmatpush2.msra.mxu0 0.0
        %591 = vmatprep.subr.mxu0 0.0
        %592 = vmatpush2.msra.mxu0 0.0
        %593 = vmatprep.subr.mxu0 0.0
        %594 = vmatpush2.msra.mxu0 0.0
        %595 = vmatprep.subr.mxu0 0.0
        %596 = vmatpush2.msra.mxu0 0.0
        %597 = vmatprep.subr.mxu0 0.0
        %598 = vmatpush2.msra.mxu0 0.0
        %599 = vmatprep.subr.mxu0 0.0
        %600 = vmatpush2.msra.mxu0 0.0
        %601 = vmatprep.subr.mxu0 0.0
        %602 = vmatpush2.msra.mxu0 0.0
        %603 = vmatprep.mubr.f32.mxu0 0.0
        %604 = vmatmul.mubr.f32.gmra.mxu0 %v512
        %v605 = vpop.f32.mrf.mxu0
        %v606 = vadd.f32 %v537, %v605
        %v607 = vpop.f32.mrf.mxu0
        %608 = vmatprep.mubr.f32.mxu0 0.0
        %609 = vmatmul.mubr.f32.gmra.mxu0 %v513
        %v610 = vpop.f32.mrf.mxu0
        %v611 = vadd.f32 %v537, %v610
        %v612 = vpop.f32.mrf.mxu0
        %613 = vdwg.mxu0
        %v614 = vmax.f32 %v606, 0.0
        %v615 = vmax.f32 %v611, 0.0
        %v616 = vld [vmem:[#allocation4] sm:$0xff]
        %v617 = vld [vmem:[#allocation4 + $0x8] sm:$0xff]
        %v618 = vld [vmem:[#allocation4 + $0x10] sm:$0xff]
        %v619 = vld [vmem:[#allocation4 + $0x18] sm:$0xff]
        %v620 = vld [vmem:[#allocation4 + $0x20] sm:$0xff]
        %v621 = vld [vmem:[#allocation4 + $0x28] sm:$0xff]
        %v622 = vld [vmem:[#allocation4 + $0x30] sm:$0xff]
        %v623 = vld [vmem:[#allocation4 + $0x38] sm:$0xff]
        %v624 = vld [vmem:[#allocation4 + $0x40] sm:$0xff]
        %v625 = vld [vmem:[#allocation4 + $0x48] sm:$0xff]
        %v626 = vld [vmem:[#allocation4 + $0x50] sm:$0xff]
        %v627 = vld [vmem:[#allocation4 + $0x58] sm:$0xff]
        %v628 = vld [vmem:[#allocation4 + $0x60] sm:$0xff]
        %v629 = vld [vmem:[#allocation4 + $0x68] sm:$0xff]
        %v630 = vld [vmem:[#allocation4 + $0x70] sm:$0xff]
        %v631 = vld [vmem:[#allocation4 + $0x78] sm:$0xff]
        %v632 = vld [vmem:[%s6] sm:$0x1]
        %v634 = vlaneseq
        %v635 = vshrl.u32 %v634, 7
        %v636 = vsub.s32 0, %v635
        %v637 = vrot.slane %v632, %v636
        %639 = vmatprep.subr.mxu0 0.0
        %640 = vmatpush1.msra.mxu0 %v631
        %641 = vmatprep.subr.mxu0 0.0
        %642 = vmatpush1.msra.mxu0 %v630
        %643 = vmatprep.subr.mxu0 0.0
        %644 = vmatpush1.msra.mxu0 %v629
        %645 = vmatprep.subr.mxu0 0.0
        %646 = vmatpush1.msra.mxu0 %v628
        %647 = vmatprep.subr.mxu0 0.0
        %648 = vmatpush1.msra.mxu0 %v627
        %649 = vmatprep.subr.mxu0 0.0
        %650 = vmatpush1.msra.mxu0 %v626
        %651 = vmatprep.subr.mxu0 0.0
        %652 = vmatpush1.msra.mxu0 %v625
        %653 = vmatprep.subr.mxu0 0.0
        %654 = vmatpush1.msra.mxu0 %v624
        %655 = vmatprep.subr.mxu0 0.0
        %656 = vmatpush1.msra.mxu0 %v623
        %657 = vmatprep.subr.mxu0 0.0
        %658 = vmatpush1.msra.mxu0 %v622
        %659 = vmatprep.subr.mxu0 0.0
        %660 = vmatpush1.msra.mxu0 %v621
        %661 = vmatprep.subr.mxu0 0.0
        %662 = vmatpush1.msra.mxu0 %v620
        %663 = vmatprep.subr.mxu0 0.0
        %664 = vmatpush1.msra.mxu0 %v619
        %665 = vmatprep.subr.mxu0 0.0
        %666 = vmatpush1.msra.mxu0 %v618
        %667 = vmatprep.subr.mxu0 0.0
        %668 = vmatpush1.msra.mxu0 %v617
        %669 = vmatprep.subr.mxu0 0.0
        %670 = vmatpush1.msra.mxu0 %v616
        %671 = vmatprep.subr.mxu0 0.0
        %672 = vmatpush2.msra.mxu0 0.0
        %673 = vmatprep.subr.mxu0 0.0
        %674 = vmatpush2.msra.mxu0 0.0
        %675 = vmatprep.subr.mxu0 0.0
        %676 = vmatpush2.msra.mxu0 0.0
        %677 = vmatprep.subr.mxu0 0.0
        %678 = vmatpush2.msra.mxu0 0.0
        %679 = vmatprep.subr.mxu0 0.0
        %680 = vmatpush2.msra.mxu0 0.0
        %681 = vmatprep.subr.mxu0 0.0
        %682 = vmatpush2.msra.mxu0 0.0
        %683 = vmatprep.subr.mxu0 0.0
        %684 = vmatpush2.msra.mxu0 0.0
        %685 = vmatprep.subr.mxu0 0.0
        %686 = vmatpush2.msra.mxu0 0.0
        %687 = vmatprep.subr.mxu0 0.0
        %688 = vmatpush2.msra.mxu0 0.0
        %689 = vmatprep.subr.mxu0 0.0
        %690 = vmatpush2.msra.mxu0 0.0
        %691 = vmatprep.subr.mxu0 0.0
        %692 = vmatpush2.msra.mxu0 0.0
        %693 = vmatprep.subr.mxu0 0.0
        %694 = vmatpush2.msra.mxu0 0.0
        %695 = vmatprep.subr.mxu0 0.0
        %696 = vmatpush2.msra.mxu0 0.0
        %697 = vmatprep.subr.mxu0 0.0
        %698 = vmatpush2.msra.mxu0 0.0
        %699 = vmatprep.subr.mxu0 0.0
        %700 = vmatpush2.msra.mxu0 0.0
        %701 = vmatprep.subr.mxu0 0.0
        %702 = vmatpush2.msra.mxu0 0.0
        %703 = vmatprep.mubr.f32.mxu0 0.0
        %704 = vmatmul.mubr.f32.gmra.mxu0 %v614
        %v705 = vpop.f32.mrf.mxu0
        %v706 = vadd.f32 %v637, %v705
        %v707 = vpop.f32.mrf.mxu0
        %708 = vmatprep.mubr.f32.mxu0 0.0
        %709 = vmatmul.mubr.f32.gmra.mxu0 %v615
        %v710 = vpop.f32.mrf.mxu0
        %v711 = vadd.f32 %v637, %v710
        %v712 = vpop.f32.mrf.mxu0
        %713 = vdwg.mxu0
        %v714 = vsub.f32 0.0, %v706
        %v715 = vsub.f32 0.0, %v711
        %v716 = vmul.f32 %v714, 1.442695
        %v717 = vpow.pop %v716
        %v718 = vmul.f32 %v715, 1.442695
        %v719 = vpow.pop %v718
        %v720 = vadd.f32 %v717, 1.0
        %v721 = vadd.f32 %v719, 1.0
        %v722 = vrcp.pop %v720
        %v723 = vmul.f32 1.0, %v722
        %v724 = vrcp.pop %v721
        %v725 = vmul.f32 1.0, %v724
        %726 = vst [vmem:[%s310] sm:$0xff] %v723
        %727 = vst [vmem:[%s310 + $0x8] sm:$0xff] %v725
        %s728 = smul.u32 2, %s20
        %p729 = scmp.lt.s32.totalorder %s728, 3
        %s730 = scalar_select %p729, %s728, 3
        %s731 = smul.addr %s730, 8
        %s732 = scalar_lea.vmem %s7, %s731
        // Predicated region
        $region57: #{fused_mlp.1} parent=47 // pred_check
          %p733 = pneg %p190
        $region58: #{fused_mlp.1} parent=47 // pred_check_branch
          %735 = sbr.rel (%p733) target = $region60
        $region59: #{fused_mlp.1} parent=47 // pred_region
          %s736 = smul.u32 2, %s20
        $region60: #{fused_mlp.1} parent=47 // pred_fallthru
          _
      $region48: #{fused_mlp.1} parent=5 // pred_fallthru
        _
      %p737 = scmp.le.s32.totalorder 2, %s15
      // Predicated region
      $region61: #{fused_mlp.1} parent=5 // pred_check
        %p738 = pneg %p737
      $region62: #{fused_mlp.1} parent=5 // pred_check_branch
        %740 = sbr.rel (%p738) target = $region64
      $region63: #{fused_mlp.1} parent=5 // pred_region
        %s741 = ssub.s32 %s15, 2
        // Predicated region
        $region65: #{fused_mlp.1} parent=63 // pred_check
          %p742 = pneg %p196
        $region66: #{fused_mlp.1} parent=63 // pred_check_branch
          %744 = sbr.rel (%p742) target = $region68
        $region67: #{fused_mlp.1} parent=63 // pred_region
          %s745 = smul.u32 2, %s21
          %p746 = scmp.lt.s32.totalorder %s745, 3
          %s747 = scalar_select %p746, %s745, 3
          %s748 = smul.addr %s747, 8
          %s749 = scalar_lea.vmem %s7, %s748
        $region68: #{fused_mlp.1} parent=63 // pred_fallthru
          _
      $region64: #{fused_mlp.1} parent=5 // pred_fallthru
        _
    $region6: #{fused_mlp.1} parent=1 // loop_footer
      %s19 = sadd.s32 1, %s15
    $region7: #{fused_mlp.1} parent=1 // loop_footer_branch
      %14 = sbr.rel target = $region3
    $region8: #{fused_mlp.1} parent=1 // loop_exit
      _
    %750 = vsyncpa [#allocation3], 1
    %s751 = scalar_lea.sflag [#allocation3], 1
    %752 = vsyncpa %s751, 1
    %753 = vsyncpa [#allocation5], 1

// kernel: fused_mlp.1
$region0: #{fused_mlp.1}
  #allocation0 [shape = 'u32[]', space=smem, size = 0x4, offset = 0x4, fixed_abs, tag = 'smem constant byte address 0x4 - core index']
  #allocation1 [shape = 'u32[144,128]{1,0:T(1,128)}', space=vmem, size = 0x12000, scoped, tag = 'internal scratch']
  %s0 = inlined_call_operand.vmem [shape: f32[32,128], index: 0, kind: input, shape index: {}]
  %s1 = inlined_call_operand.vmem [shape: f32[128,128], index: 1, kind: input, shape index: {}]
  %s2 = inlined_call_operand.vmem [shape: f32[1,128], index: 2, kind: input, shape index: {}]
  %s3 = inlined_call_operand.hbm [shape: f32[2,128,128], index: 3, kind: input, shape index: {}]
  %s4 = inlined_call_operand.vmem [shape: f32[2,1,128], index: 4, kind: input, shape index: {}]
  %s5 = inlined_call_operand.hbm [shape: f32[128,128], index: 5, kind: input, shape index: {}]
  %s6 = inlined_call_operand.vmem [shape: f32[1,128], index: 6, kind: input, shape index: {}]
  %s7 = inlined_call_operand.vmem [shape: f32[32,128], index: 7, kind: output, shape index: {}]
  %s8 = sld [smem:[#allocation0]]
  $region69: #{fused_mlp.1} parent=0
    _
  %s10 = ssub.s32 1, %s8
  %s11 = scalar_select 0, %s10, %s8
  $region1: #{fused_mlp.1} parent=0
    #allocation2 [shape = 'u8[131072]{0}', space=vmem, size = 0x20000, scoped, tag = 'input window, operand 3, single buffered']
    #allocation3 [shape = 's32[2]{0}', space=sflag, size = 0x8, scoped, tag = 'scoped memory for fused_mlp.1']
    #allocation4 [shape = 'u8[65536]{0}', space=vmem, size = 0x10000, scoped, tag = 'input window, operand 5, single buffered']
    #allocation5 [shape = 's32[1]{0}', space=sflag, size = 0x4, scoped, tag = 'scoped memory for fused_mlp.1']
    %12 = vsyncpa [#allocation3], 0
    %13 = vsyncpa [#allocation5], 0
    loop: start=0, step=1, limit=4
    $region2: #{fused_mlp.1} parent=1 // loop_pre_header
      _
    $region3: #{fused_mlp.1} parent=1 // loop_header
      %s15 = sphi 0, %s19
      %p16 = scmp.ge.s32.totalorder %s15, 4
      %s25 = sphi 0, %s27
      %s28 = sphi 0, %s25
      %s29 = sphi 0, %s28
      %s45 = sphi 0, %s29
      %s49 = sphi 0, %s49
      %s51 = sphi 0, %s49
      %s52 = sphi 0, %s51
      %s66 = sphi 0, %s52
      %s70 = sphi 0, %s70
      %s72 = sphi 0, %s70
      %s73 = sphi 0, %s72
      %s87 = sphi 0, %s73
      %s91 = sphi 0, %s91
      %s93 = sphi 0, %s91
      %s94 = sphi 0, %s93
      %s108 = sphi 0, %s94
      %s112 = sphi 0, %s112
      %s114 = sphi 0, %s112
      %s115 = sphi 0, %s114
      %s129 = sphi 0, %s115
      %s133 = sphi 0, %s133
      %s135 = sphi 0, %s133
      %s136 = sphi 0, %s135
      %s150 = sphi 0, %s136
      %s154 = sphi 0, %s154
      %s156 = sphi 0, %s154
      %s157 = sphi 0, %s156
      %s171 = sphi 0, %s157
      %s177 = sphi 0, %s179
      %s180 = sphi 0, %s177
      %s181 = sphi 0, %s180
      %s197 = sphi 0, %s181
    $region4: #{fused_mlp.1} parent=1 // loop_header_branch
      %18 = sbr.rel (%p16) target = $region8
    $region5: #{fused_mlp.1} parent=1 // loop_body
      %s20 = ssub.s32 %s15, 1
      %s21 = ssub.s32 %s15, 2
      %s22 = sadd.s32 %s15, 1
      %s23 = ssub.s32 %s15, %s22
      %p24 = scmp.eq.s32.totalorder %s23, 0
      %s26 = sadd.s32 %s25, 1
      %s27 = scalar_select %p24, %s25, %s26
      %p30 = pneg %p24
      %p31 = scmp.eq.s32.totalorder %s15, 1
      %p32 = por %p30, %p31
      %p33 = scmp.ne.s32.totalorder %s25, %s28
      %p34 = scmp.eq.s32.totalorder %s15, 0
      %p35 = por %p33, %p34
      %p36 = scmp.ne.s32.totalorder %s25, %s28
      %p37 = scmp.eq.s32.totalorder %s20, 1
      %p38 = por %p36, %p37
      %p39 = scmp.ne.s32.totalorder %s28, %s29
      %p40 = scmp.eq.s32.totalorder %s20, 0
      %p41 = por %p39, %p40
      %p42 = scmp.ne.s32.totalorder %s28, %s29
      %p43 = scmp.eq.s32.totalorder %s21, 1
      %p44 = por %p42, %p43
      %p46 = scmp.ne.s32.totalorder %s29, %s45
      %p47 = scmp.eq.s32.totalorder %s21, 0
      %p48 = por %p46, %p47
      %s50 = sadd.s32 %s49, 1
      %p53 = scmp.eq.s32.totalorder %s15, 1
      %p54 = scmp.ne.s32.totalorder %s49, %s51
      %p55 = scmp.eq.s32.totalorder %s15, 0
      %p56 = por %p54, %p55
      %p57 = scmp.ne.s32.totalorder %s49, %s51
      %p58 = scmp.eq.s32.totalorder %s20, 1
      %p59 = por %p57, %p58
      %p60 = scmp.ne.s32.totalorder %s51, %s52
      %p61 = scmp.eq.s32.totalorder %s20, 0
      %p62 = por %p60, %p61
      %p63 = scmp.ne.s32.totalorder %s51, %s52
      %p64 = scmp.eq.s32.totalorder %s21, 1
      %p65 = por %p63, %p64
      %p67 = scmp.ne.s32.totalorder %s52, %s66
      %p68 = scmp.eq.s32.totalorder %s21, 0
      %p69 = por %p67, %p68
      %s71 = sadd.s32 %s70, 1
      %p74 = scmp.eq.s32.totalorder %s15, 1
      %p75 = scmp.ne.s32.totalorder %s70, %s72
      %p76 = scmp.eq.s32.totalorder %s15, 0
      %p77 = por %p75, %p76
      %p78 = scmp.ne.s32.totalorder %s70, %s72
      %p79 = scmp.eq.s32.totalorder %s20, 1
      %p80 = por %p78, %p79
      %p81 = scmp.ne.s32.totalorder %s72, %s73
      %p82 = scmp.eq.s32.totalorder %s20, 0
      %p83 = por %p81, %p82
      %p84 = scmp.ne.s32.totalorder %s72, %s73
      %p85 = scmp.eq.s32.totalorder %s21, 1
      %p86 = por %p84, %p85
      %p88 = scmp.ne.s32.totalorder %s73, %s87
      %p89 = scmp.eq.s32.totalorder %s21, 0
      %p90 = por %p88, %p89
      %s92 = sadd.s32 %s91, 1
      %p95 = scmp.eq.s32.totalorder %s15, 1
      %p96 = scmp.ne.s32.totalorder %s91, %s93
      %p97 = scmp.eq.s32.totalorder %s15, 0
      %p98 = por %p96, %p97
      %p99 = scmp.ne.s32.totalorder %s91, %s93
      %p100 = scmp.eq.s32.totalorder %s20, 1
      %p101 = por %p99, %p100
      %p102 = scmp.ne.s32.totalorder %s93, %s94
      %p103 = scmp.eq.s32.totalorder %s20, 0
      %p104 = por %p102, %p103
      %p105 = scmp.ne.s32.totalorder %s93, %s94
      %p106 = scmp.eq.s32.totalorder %s21, 1
      %p107 = por %p105, %p106
      %p109 = scmp.ne.s32.totalorder %s94, %s108
      %p110 = scmp.eq.s32.totalorder %s21, 0
      %p111 = por %p109, %p110
      %s113 = sadd.s32 %s112, 1
      %p116 = scmp.eq.s32.totalorder %s15, 1
      %p117 = scmp.ne.s32.totalorder %s112, %s114
      %p118 = scmp.eq.s32.totalorder %s15, 0
      %p119 = por %p117, %p118
      %p120 = scmp.ne.s32.totalorder %s112, %s114
      %p121 = scmp.eq.s32.totalorder %s20, 1
      %p122 = por %p120, %p121
      %p123 = scmp.ne.s32.totalorder %s114, %s115
      %p124 = scmp.eq.s32.totalorder %s20, 0
      %p125 = por %p123, %p124
      %p126 = scmp.ne.s32.totalorder %s114, %s115
      %p127 = scmp.eq.s32.totalorder %s21, 1
      %p128 = por %p126, %p127
      %p130 = scmp.ne.s32.totalorder %s115, %s129
      %p131 = scmp.eq.s32.totalorder %s21, 0
      %p132 = por %p130, %p131
      %s134 = sadd.s32 %s133, 1
      %p137 = scmp.eq.s32.totalorder %s15, 1
      %p138 = scmp.ne.s32.totalorder %s133, %s135
      %p139 = scmp.eq.s32.totalorder %s15, 0
      %p140 = por %p138, %p139
      %p141 = scmp.ne.s32.totalorder %s133, %s135
      %p142 = scmp.eq.s32.totalorder %s20, 1
      %p143 = por %p141, %p142
      %p144 = scmp.ne.s32.totalorder %s135, %s136
      %p145 = scmp.eq.s32.totalorder %s20, 0
      %p146 = por %p144, %p145
      %p147 = scmp.ne.s32.totalorder %s135, %s136
      %p148 = scmp.eq.s32.totalorder %s21, 1
      %p149 = por %p147, %p148
      %p151 = scmp.ne.s32.totalorder %s136, %s150
      %p152 = scmp.eq.s32.totalorder %s21, 0
      %p153 = por %p151, %p152
      %s155 = sadd.s32 %s154, 1
      %p158 = scmp.eq.s32.totalorder %s15, 1
      %p159 = scmp.ne.s32.totalorder %s154, %s156
      %p160 = scmp.eq.s32.totalorder %s15, 0
      %p161 = por %p159, %p160
      %p162 = scmp.ne.s32.totalorder %s154, %s156
      %p163 = scmp.eq.s32.totalorder %s20, 1
      %p164 = por %p162, %p163
      %p165 = scmp.ne.s32.totalorder %s156, %s157
      %p166 = scmp.eq.s32.totalorder %s20, 0
      %p167 = por %p165, %p166
      %p168 = scmp.ne.s32.totalorder %s156, %s157
      %p169 = scmp.eq.s32.totalorder %s21, 1
      %p170 = por %p168, %p169
      %p172 = scmp.ne.s32.totalorder %s157, %s171
      %p173 = scmp.eq.s32.totalorder %s21, 0
      %p174 = por %p172, %p173
      %s175 = ssub.s32 %s15, %s22
      %p176 = scmp.eq.s32.totalorder %s175, 0
      %s178 = sadd.s32 %s177, 1
      %s179 = scalar_select %p176, %s177, %s178
      %p182 = pneg %p176
      %p183 = scmp.eq.s32.totalorder %s15, 1
      %p184 = por %p182, %p183
      %p185 = scmp.ne.s32.totalorder %s177, %s180
      %p186 = scmp.eq.s32.totalorder %s15, 0
      %p187 = por %p185, %p186
      %p188 = scmp.ne.s32.totalorder %s177, %s180
      %p189 = scmp.eq.s32.totalorder %s20, 1
      %p190 = por %p188, %p189
      %p191 = scmp.ne.s32.totalorder %s180, %s181
      %p192 = scmp.eq.s32.totalorder %s20, 0
      %p193 = por %p191, %p192
      %p194 = scmp.ne.s32.totalorder %s180, %s181
      %p195 = scmp.eq.s32.totalorder %s21, 1
      %p196 = por %p194, %p195
      %p198 = scmp.ne.s32.totalorder %s181, %s197
      %p199 = scmp.eq.s32.totalorder %s21, 0
      %p200 = por %p198, %p199
      %p201 = scmp.le.s32.totalorder 1, %s15
      %p202 = scmp.lt.s32.totalorder %s15, 3
      %p203 = pnand %p201, %p202
      %p204 = pneg %p203
      // Predicated region
      $region9: #{fused_mlp.1} parent=5 // pred_check
        _
      $region10: #{fused_mlp.1} parent=5 // pred_check_branch
        %206 = sbr.rel (%p203) target = $region12
      $region11: #{fused_mlp.1} parent=5 // pred_region
        %s207 = ssub.s32 %s15, 1
        // Predicated region
        $region13: #{fused_mlp.1} parent=11 // pred_check
          %p208 = pneg %p62
        $region14: #{fused_mlp.1} parent=11 // pred_check_branch
          %210 = sbr.rel (%p208) target = $region16
        $region15: #{fused_mlp.1} parent=11 // pred_region
          _
        $region16: #{fused_mlp.1} parent=11 // pred_fallthru
          _
        // Predicated region
        $region17: #{fused_mlp.1} parent=11 // pred_check
          %p211 = pneg %p83
        $region18: #{fused_mlp.1} parent=11 // pred_check_branch
          %213 = sbr.rel (%p211) target = $region20
        $region19: #{fused_mlp.1} parent=11 // pred_region
          _
        $region20: #{fused_mlp.1} parent=11 // pred_fallthru
          _
        // Predicated region
        $region21: #{fused_mlp.1} parent=11 // pred_check
          %p214 = pneg %p104
        $region22: #{fused_mlp.1} parent=11 // pred_check_branch
          %216 = sbr.rel (%p214) target = $region24
        $region23: #{fused_mlp.1} parent=11 // pred_region
          %s218 = ssub.s32 4096, 4096
          %219 = vsyncadd [#allocation3], %s218
          %s220 = sshll.u32 [#allocation2], 4
          %s221 = int_to_ptr.vmem [resolvable:$true] %s220
          %226 = dma.hbm_to_vmem [thread:$0]  %s3, 4096, %s221, [#allocation3], 128, 128, 8
        $region24: #{fused_mlp.1} parent=11 // pred_fallthru
          _
        // Predicated region
        $region25: #{fused_mlp.1} parent=11 // pred_check
          %p227 = pneg %p125
        $region26: #{fused_mlp.1} parent=11 // pred_check_branch
          %229 = sbr.rel (%p227) target = $region28
        $region27: #{fused_mlp.1} parent=11 // pred_region
          _
        $region28: #{fused_mlp.1} parent=11 // pred_fallthru
          _
        // Predicated region
        $region29: #{fused_mlp.1} parent=11 // pred_check
          %p230 = pneg %p146
        $region30: #{fused_mlp.1} parent=11 // pred_check_branch
          %232 = sbr.rel (%p230) target = $region32
        $region31: #{fused_mlp.1} parent=11 // pred_region
          %s234 = ssub.s32 2048, 2048
          %235 = vsyncadd [#allocation5], %s234
          %s236 = sshll.u32 [#allocation4], 4
          %s237 = int_to_ptr.vmem [resolvable:$true] %s236
          %242 = dma.hbm_to_vmem [thread:$0]  %s5, 2048, %s237, [#allocation5], 128, 128, 8
        $region32: #{fused_mlp.1} parent=11 // pred_fallthru
          _
        // Predicated region
        $region33: #{fused_mlp.1} parent=11 // pred_check
          %p243 = pneg %p167
        $region34: #{fused_mlp.1} parent=11 // pred_check_branch
          %245 = sbr.rel (%p243) target = $region36
        $region35: #{fused_mlp.1} parent=11 // pred_region
          _
        $region36: #{fused_mlp.1} parent=11 // pred_fallthru
          _
      $region12: #{fused_mlp.1} parent=5 // pred_fallthru
        _
      %p246 = scmp.lt.s32.totalorder %s15, 2
      // Predicated region
      $region37: #{fused_mlp.1} parent=5 // pred_check
        %p247 = pneg %p246
      $region38: #{fused_mlp.1} parent=5 // pred_check_branch
        %249 = sbr.rel (%p247) target = $region40
      $region39: #{fused_mlp.1} parent=5 // pred_region
        // Predicated region
        $region41: #{fused_mlp.1} parent=39 // pred_check
          %p250 = pneg %p35
        $region42: #{fused_mlp.1} parent=39 // pred_check_branch
          %252 = sbr.rel (%p250) target = $region44
        $region43: #{fused_mlp.1} parent=39 // pred_region
          %s253 = smul.u32 2, %s15
          %p254 = scmp.lt.s32.totalorder %s253, 3
          %s255 = scalar_select %p254, %s253, 3
          %s256 = smul.addr %s255, 8
          %s257 = scalar_lea.vmem %s0, %s256
          %s258 = smul.u32 2, %s15
        $region44: #{fused_mlp.1} parent=39 // pred_fallthru
          _
      $region40: #{fused_mlp.1} parent=5 // pred_fallthru
        _
      %p259 = scmp.le.s32.totalorder 1, %s15
      %p260 = scmp.lt.s32.totalorder %s15, 3
      %p261 = pnand %p259, %p260
      %p262 = pneg %p261
      // Predicated region
      $region45: #{fused_mlp.1} parent=5 // pred_check
        _
      $region46: #{fused_mlp.1} parent=5 // pred_check_branch
        %264 = sbr.rel (%p261) target = $region48
      $region47: #{fused_mlp.1} parent=5 // pred_region
        %s265 = ssub.s32 %s15, 1
        // Predicated region
        $region49: #{fused_mlp.1} parent=47 // pred_check
          %p266 = pneg %p104
        $region50: #{fused_mlp.1} parent=47 // pred_check_branch
          %268 = sbr.rel (%p266) target = $region52
        $region51: #{fused_mlp.1} parent=47 // pred_region
          %269 = dma.done [#allocation3], 4096
        $region52: #{fused_mlp.1} parent=47 // pred_fallthru
          _
        // Predicated region
        $region53: #{fused_mlp.1} parent=47 // pred_check
          %p270 = pneg %p146
        $region54: #{fused_mlp.1} parent=47 // pred_check_branch
          %272 = sbr.rel (%p270) target = $region56
        $region55: #{fused_mlp.1} parent=47 // pred_region
          %273 = dma.done [#allocation5], 2048
        $region56: #{fused_mlp.1} parent=47 // pred_fallthru
          _
        %s274 = smul.u32 2, %s20
        %p275 = scmp.lt.s32.totalorder %s274, 3
        %s276 = scalar_select %p275, %s274, 3
        %s277 = smul.addr %s276, 8
        %s278 = scalar_lea.vmem %s0, %s277
        %p279 = pneg %p41
        %p280 = pneg %p38
        %p281 = pneg %p62
        %p282 = pneg %p59
        %p283 = pneg %p83
        %p284 = pneg %p80
        %p285 = pneg %p104
        %p286 = pneg %p101
        %p287 = pneg %p125
        %p288 = pneg %p122
        %p289 = pneg %p146
        %p290 = pneg %p143
        %p291 = pneg %p167
        %p292 = pneg %p164
        %p293 = pneg %p193
        %p294 = pneg %p190
        %s295 = smul.u32 2, %s20
        %p296 = scmp.lt.s32.totalorder %s295, 3
        %s297 = scalar_select %p296, %s295, 3
        %s298 = smul.addr %s297, 8
        %s299 = scalar_lea.vmem %s7, %s298
        %s300 = smul.u32 2, %s20
        %p301 = scmp.lt.s32.totalorder %s300, 3
        %s302 = scalar_select %p301, %s300, 3
        %s303 = smul.addr %s302, 8
        %s304 = scalar_lea.vmem %s0, %s303
        %s305 = smul.u32 2, %s20
        %s306 = smul.u32 2, %s20
        %p307 = scmp.lt.s32.totalorder %s306, 3
        %s308 = scalar_select %p307, %s306, 3
        %s309 = smul.addr %s308, 8
        %s310 = scalar_lea.vmem %s7, %s309
        %s311 = smul.u32 2, %s20
        %v312 = vld [vmem:[%s304] sm:$0xff]
        %v313 = vld [vmem:[%s304 + $0x8] sm:$0xff]
        %v314 = vld [vmem:[%s1] sm:$0xff]
        %v315 = vld [vmem:[%s1 + $0x8] sm:$0xff]
        %v316 = vld [vmem:[%s1 + $0x10] sm:$0xff]
        %v317 = vld [vmem:[%s1 + $0x18] sm:$0xff]
        %v318 = vld [vmem:[%s1 + $0x20] sm:$0xff]
        %v319 = vld [vmem:[%s1 + $0x28] sm:$0xff]
        %v320 = vld [vmem:[%s1 + $0x30] sm:$0xff]
        %v321 = vld [vmem:[%s1 + $0x38] sm:$0xff]
        %v322 = vld [vmem:[%s1 + $0x40] sm:$0xff]
        %v323 = vld [vmem:[%s1 + $0x48] sm:$0xff]
        %v324 = vld [vmem:[%s1 + $0x50] sm:$0xff]
        %v325 = vld [vmem:[%s1 + $0x58] sm:$0xff]
        %v326 = vld [vmem:[%s1 + $0x60] sm:$0xff]
        %v327 = vld [vmem:[%s1 + $0x68] sm:$0xff]
        %v328 = vld [vmem:[%s1 + $0x70] sm:$0xff]
        %v329 = vld [vmem:[%s1 + $0x78] sm:$0xff]
        %v330 = vld [vmem:[%s2] sm:$0x1]
        %v332 = vlaneseq
        %v333 = vshrl.u32 %v332, 7
        %v334 = vsub.s32 0, %v333
        %v335 = vrot.slane %v330, %v334
        %337 = vmatprep.subr.mxu0 0.0
        %338 = vmatpush1.msra.mxu0 %v329
        %339 = vmatprep.subr.mxu0 0.0
        %340 = vmatpush1.msra.mxu0 %v328
        %341 = vmatprep.subr.mxu0 0.0
        %342 = vmatpush1.msra.mxu0 %v327
        %343 = vmatprep.subr.mxu0 0.0
        %344 = vmatpush1.msra.mxu0 %v326
        %345 = vmatprep.subr.mxu0 0.0
        %346 = vmatpush1.msra.mxu0 %v325
        %347 = vmatprep.subr.mxu0 0.0
        %348 = vmatpush1.msra.mxu0 %v324
        %349 = vmatprep.subr.mxu0 0.0
        %350 = vmatpush1.msra.mxu0 %v323
        %351 = vmatprep.subr.mxu0 0.0
        %352 = vmatpush1.msra.mxu0 %v322
        %353 = vmatprep.subr.mxu0 0.0
        %354 = vmatpush1.msra.mxu0 %v321
        %355 = vmatprep.subr.mxu0 0.0
        %356 = vmatpush1.msra.mxu0 %v320
        %357 = vmatprep.subr.mxu0 0.0
        %358 = vmatpush1.msra.mxu0 %v319
        %359 = vmatprep.subr.mxu0 0.0
        %360 = vmatpush1.msra.mxu0 %v318
        %361 = vmatprep.subr.mxu0 0.0
        %362 = vmatpush1.msra.mxu0 %v317
        %363 = vmatprep.subr.mxu0 0.0
        %364 = vmatpush1.msra.mxu0 %v316
        %365 = vmatprep.subr.mxu0 0.0
        %366 = vmatpush1.msra.mxu0 %v315
        %367 = vmatprep.subr.mxu0 0.0
        %368 = vmatpush1.msra.mxu0 %v314
        %369 = vmatprep.subr.mxu0 0.0
        %370 = vmatpush2.msra.mxu0 0.0
        %371 = vmatprep.subr.mxu0 0.0
        %372 = vmatpush2.msra.mxu0 0.0
        %373 = vmatprep.subr.mxu0 0.0
        %374 = vmatpush2.msra.mxu0 0.0
        %375 = vmatprep.subr.mxu0 0.0
        %376 = vmatpush2.msra.mxu0 0.0
        %377 = vmatprep.subr.mxu0 0.0
        %378 = vmatpush2.msra.mxu0 0.0
        %379 = vmatprep.subr.mxu0 0.0
        %380 = vmatpush2.msra.mxu0 0.0
        %381 = vmatprep.subr.mxu0 0.0
        %382 = vmatpush2.msra.mxu0 0.0
        %383 = vmatprep.subr.mxu0 0.0
        %384 = vmatpush2.msra.mxu0 0.0
        %385 = vmatprep.subr.mxu0 0.0
        %386 = vmatpush2.msra.mxu0 0.0
        %387 = vmatprep.subr.mxu0 0.0
        %388 = vmatpush2.msra.mxu0 0.0
        %389 = vmatprep.subr.mxu0 0.0
        %390 = vmatpush2.msra.mxu0 0.0
        %391 = vmatprep.subr.mxu0 0.0
        %392 = vmatpush2.msra.mxu0 0.0
        %393 = vmatprep.subr.mxu0 0.0
        %394 = vmatpush2.msra.mxu0 0.0
        %395 = vmatprep.subr.mxu0 0.0
        %396 = vmatpush2.msra.mxu0 0.0
        %397 = vmatprep.subr.mxu0 0.0
        %398 = vmatpush2.msra.mxu0 0.0
        %399 = vmatprep.subr.mxu0 0.0
        %400 = vmatpush2.msra.mxu0 0.0
        %401 = vmatprep.mubr.f32.mxu0 0.0
        %402 = vmatmul.mubr.f32.gmra.mxu0 %v312
        %v403 = vpop.f32.mrf.mxu0
        %v404 = vadd.f32 %v335, %v403
        %v405 = vpop.f32.mrf.mxu0
        %406 = vmatprep.mubr.f32.mxu0 0.0
        %407 = vmatmul.mubr.f32.gmra.mxu0 %v313
        %v408 = vpop.f32.mrf.mxu0
        %v409 = vadd.f32 %v335, %v408
        %v410 = vpop.f32.mrf.mxu0
        %411 = vdwg.mxu0
        %v412 = vmax.f32 %v404, 0.0
        %v413 = vmax.f32 %v409, 0.0
        %v414 = vld [vmem:[#allocation2] sm:$0xff]
        %v415 = vld [vmem:[#allocation2 + $0x8] sm:$0xff]
        %v416 = vld [vmem:[#allocation2 + $0x10] sm:$0xff]
        %v417 = vld [vmem:[#allocation2 + $0x18] sm:$0xff]
        %v418 = vld [vmem:[#allocation2 + $0x20] sm:$0xff]
        %v419 = vld [vmem:[#allocation2 + $0x28] sm:$0xff]
        %v420 = vld [vmem:[#allocation2 + $0x30] sm:$0xff]
        %v421 = vld [vmem:[#allocation2 + $0x38] sm:$0xff]
        %v422 = vld [vmem:[#allocation2 + $0x40] sm:$0xff]
        %v423 = vld [vmem:[#allocation2 + $0x48] sm:$0xff]
        %v424 = vld [vmem:[#allocation2 + $0x50] sm:$0xff]
        %v425 = vld [vmem:[#allocation2 + $0x58] sm:$0xff]
        %v426 = vld [vmem:[#allocation2 + $0x60] sm:$0xff]
        %v427 = vld [vmem:[#allocation2 + $0x68] sm:$0xff]
        %v428 = vld [vmem:[#allocation2 + $0x70] sm:$0xff]
        %v429 = vld [vmem:[#allocation2 + $0x78] sm:$0xff]
        %v430 = vld [vmem:[%s4] sm:$0x1]
        %v432 = vlaneseq
        %v433 = vshrl.u32 %v432, 7
        %v434 = vsub.s32 0, %v433
        %v435 = vrot.slane %v430, %v434
        %437 = vmatprep.subr.mxu0 0.0
        %438 = vmatpush1.msra.mxu0 %v429
        %439 = vmatprep.subr.mxu0 0.0
        %440 = vmatpush1.msra.mxu0 %v428
        %441 = vmatprep.subr.mxu0 0.0
        %442 = vmatpush1.msra.mxu0 %v427
        %443 = vmatprep.subr.mxu0 0.0
        %444 = vmatpush1.msra.mxu0 %v426
        %445 = vmatprep.subr.mxu0 0.0
        %446 = vmatpush1.msra.mxu0 %v425
        %447 = vmatprep.subr.mxu0 0.0
        %448 = vmatpush1.msra.mxu0 %v424
        %449 = vmatprep.subr.mxu0 0.0
        %450 = vmatpush1.msra.mxu0 %v423
        %451 = vmatprep.subr.mxu0 0.0
        %452 = vmatpush1.msra.mxu0 %v422
        %453 = vmatprep.subr.mxu0 0.0
        %454 = vmatpush1.msra.mxu0 %v421
        %455 = vmatprep.subr.mxu0 0.0
        %456 = vmatpush1.msra.mxu0 %v420
        %457 = vmatprep.subr.mxu0 0.0
        %458 = vmatpush1.msra.mxu0 %v419
        %459 = vmatprep.subr.mxu0 0.0
        %460 = vmatpush1.msra.mxu0 %v418
        %461 = vmatprep.subr.mxu0 0.0
        %462 = vmatpush1.msra.mxu0 %v417
        %463 = vmatprep.subr.mxu0 0.0
        %464 = vmatpush1.msra.mxu0 %v416
        %465 = vmatprep.subr.mxu0 0.0
        %466 = vmatpush1.msra.mxu0 %v415
        %467 = vmatprep.subr.mxu0 0.0
        %468 = vmatpush1.msra.mxu0 %v414
        %469 = vmatprep.subr.mxu0 0.0
        %470 = vmatpush2.msra.mxu0 0.0
        %471 = vmatprep.subr.mxu0 0.0
        %472 = vmatpush2.msra.mxu0 0.0
        %473 = vmatprep.subr.mxu0 0.0
        %474 = vmatpush2.msra.mxu0 0.0
        %475 = vmatprep.subr.mxu0 0.0
        %476 = vmatpush2.msra.mxu0 0.0
        %477 = vmatprep.subr.mxu0 0.0
        %478 = vmatpush2.msra.mxu0 0.0
        %479 = vmatprep.subr.mxu0 0.0
        %480 = vmatpush2.msra.mxu0 0.0
        %481 = vmatprep.subr.mxu0 0.0
        %482 = vmatpush2.msra.mxu0 0.0
        %483 = vmatprep.subr.mxu0 0.0
        %484 = vmatpush2.msra.mxu0 0.0
        %485 = vmatprep.subr.mxu0 0.0
        %486 = vmatpush2.msra.mxu0 0.0
        %487 = vmatprep.subr.mxu0 0.0
        %488 = vmatpush2.msra.mxu0 0.0
        %489 = vmatprep.subr.mxu0 0.0
        %490 = vmatpush2.msra.mxu0 0.0
        %491 = vmatprep.subr.mxu0 0.0
        %492 = vmatpush2.msra.mxu0 0.0
        %493 = vmatprep.subr.mxu0 0.0
        %494 = vmatpush2.msra.mxu0 0.0
        %495 = vmatprep.subr.mxu0 0.0
        %496 = vmatpush2.msra.mxu0 0.0
        %497 = vmatprep.subr.mxu0 0.0
        %498 = vmatpush2.msra.mxu0 0.0
        %499 = vmatprep.subr.mxu0 0.0
        %500 = vmatpush2.msra.mxu0 0.0
        %501 = vmatprep.mubr.f32.mxu0 0.0
        %502 = vmatmul.mubr.f32.gmra.mxu0 %v412
        %v503 = vpop.f32.mrf.mxu0
        %v504 = vadd.f32 %v435, %v503
        %v505 = vpop.f32.mrf.mxu0
        %506 = vmatprep.mubr.f32.mxu0 0.0
        %507 = vmatmul.mubr.f32.gmra.mxu0 %v413
        %v508 = vpop.f32.mrf.mxu0
        %v509 = vadd.f32 %v435, %v508
        %v510 = vpop.f32.mrf.mxu0
        %511 = vdwg.mxu0
        %v512 = vmax.f32 %v504, 0.0
        %v513 = vmax.f32 %v509, 0.0
        %s514 = scalar_lea.vmem [#allocation2], 128
        %v515 = vld [vmem:[%s514] sm:$0xff]
        %v516 = vld [vmem:[%s514 + $0x8] sm:$0xff]
        %v517 = vld [vmem:[%s514 + $0x10] sm:$0xff]
        %v518 = vld [vmem:[%s514 + $0x18] sm:$0xff]
        %v519 = vld [vmem:[%s514 + $0x20] sm:$0xff]
        %v520 = vld [vmem:[%s514 + $0x28] sm:$0xff]
        %v521 = vld [vmem:[%s514 + $0x30] sm:$0xff]
        %v522 = vld [vmem:[%s514 + $0x38] sm:$0xff]
        %v523 = vld [vmem:[%s514 + $0x40] sm:$0xff]
        %v524 = vld [vmem:[%s514 + $0x48] sm:$0xff]
        %v525 = vld [vmem:[%s514 + $0x50] sm:$0xff]
        %v526 = vld [vmem:[%s514 + $0x58] sm:$0xff]
        %v527 = vld [vmem:[%s514 + $0x60] sm:$0xff]
        %v528 = vld [vmem:[%s514 + $0x68] sm:$0xff]
        %v529 = vld [vmem:[%s514 + $0x70] sm:$0xff]
        %v530 = vld [vmem:[%s514 + $0x78] sm:$0xff]
        %s531 = scalar_lea.vmem %s4, 1
        %v532 = vld [vmem:[%s531] sm:$0x1]
        %v534 = vlaneseq
        %v535 = vshrl.u32 %v534, 7
        %v536 = vsub.s32 0, %v535
        %v537 = vrot.slane %v532, %v536
        %539 = vmatprep.subr.mxu0 0.0
        %540 = vmatpush1.msra.mxu0 %v530
        %541 = vmatprep.subr.mxu0 0.0
        %542 = vmatpush1.msra.mxu0 %v529
        %543 = vmatprep.subr.mxu0 0.0
        %544 = vmatpush1.msra.mxu0 %v528
        %545 = vmatprep.subr.mxu0 0.0
        %546 = vmatpush1.msra.mxu0 %v527
        %547 = vmatprep.subr.mxu0 0.0
        %548 = vmatpush1.msra.mxu0 %v526
        %549 = vmatprep.subr.mxu0 0.0
        %550 = vmatpush1.msra.mxu0 %v525
        %551 = vmatprep.subr.mxu0 0.0
        %552 = vmatpush1.msra.mxu0 %v524
        %553 = vmatprep.subr.mxu0 0.0
        %554 = vmatpush1.msra.mxu0 %v523
        %555 = vmatprep.subr.mxu0 0.0
        %556 = vmatpush1.msra.mxu0 %v522
        %557 = vmatprep.subr.mxu0 0.0
        %558 = vmatpush1.msra.mxu0 %v521
        %559 = vmatprep.subr.mxu0 0.0
        %560 = vmatpush1.msra.mxu0 %v520
        %561 = vmatprep.subr.mxu0 0.0
        %562 = vmatpush1.msra.mxu0 %v519
        %563 = vmatprep.subr.mxu0 0.0
        %564 = vmatpush1.msra.mxu0 %v518
        %565 = vmatprep.subr.mxu0 0.0
        %566 = vmatpush1.msra.mxu0 %v517
        %567 = vmatprep.subr.mxu0 0.0
        %568 = vmatpush1.msra.mxu0 %v516
        %569 = vmatprep.subr.mxu0 0.0
        %570 = vmatpush1.msra.mxu0 %v515
        %571 = vmatprep.subr.mxu0 0.0
        %572 = vmatpush2.msra.mxu0 0.0
        %573 = vmatprep.subr.mxu0 0.0
        %574 = vmatpush2.msra.mxu0 0.0
        %575 = vmatprep.subr.mxu0 0.0
        %576 = vmatpush2.msra.mxu0 0.0
        %577 = vmatprep.subr.mxu0 0.0
        %578 = vmatpush2.msra.mxu0 0.0
        %579 = vmatprep.subr.mxu0 0.0
        %580 = vmatpush2.msra.mxu0 0.0
        %581 = vmatprep.subr.mxu0 0.0
        %582 = vmatpush2.msra.mxu0 0.0
        %583 = vmatprep.subr.mxu0 0.0
        %584 = vmatpush2.msra.mxu0 0.0
        %585 = vmatprep.subr.mxu0 0.0
        %586 = vmatpush2.msra.mxu0 0.0
        %587 = vmatprep.subr.mxu0 0.0
        %588 = vmatpush2.msra.mxu0 0.0
        %589 = vmatprep.subr.mxu0 0.0
        %590 = vmatpush2.msra.mxu0 0.0
        %591 = vmatprep.subr.mxu0 0.0
        %592 = vmatpush2.msra.mxu0 0.0
        %593 = vmatprep.subr.mxu0 0.0
        %594 = vmatpush2.msra.mxu0 0.0
        %595 = vmatprep.subr.mxu0 0.0
        %596 = vmatpush2.msra.mxu0 0.0
        %597 = vmatprep.subr.mxu0 0.0
        %598 = vmatpush2.msra.mxu0 0.0
        %599 = vmatprep.subr.mxu0 0.0
        %600 = vmatpush2.msra.mxu0 0.0
        %601 = vmatprep.subr.mxu0 0.0
        %602 = vmatpush2.msra.mxu0 0.0
        %603 = vmatprep.mubr.f32.mxu0 0.0
        %604 = vmatmul.mubr.f32.gmra.mxu0 %v512
        %v605 = vpop.f32.mrf.mxu0
        %v606 = vadd.f32 %v537, %v605
        %v607 = vpop.f32.mrf.mxu0
        %608 = vmatprep.mubr.f32.mxu0 0.0
        %609 = vmatmul.mubr.f32.gmra.mxu0 %v513
        %v610 = vpop.f32.mrf.mxu0
        %v611 = vadd.f32 %v537, %v610
        %v612 = vpop.f32.mrf.mxu0
        %613 = vdwg.mxu0
        %v614 = vmax.f32 %v606, 0.0
        %v615 = vmax.f32 %v611, 0.0
        %v616 = vld [vmem:[#allocation4] sm:$0xff]
        %v617 = vld [vmem:[#allocation4 + $0x8] sm:$0xff]
        %v618 = vld [vmem:[#allocation4 + $0x10] sm:$0xff]
        %v619 = vld [vmem:[#allocation4 + $0x18] sm:$0xff]
        %v620 = vld [vmem:[#allocation4 + $0x20] sm:$0xff]
        %v621 = vld [vmem:[#allocation4 + $0x28] sm:$0xff]
        %v622 = vld [vmem:[#allocation4 + $0x30] sm:$0xff]
        %v623 = vld [vmem:[#allocation4 + $0x38] sm:$0xff]
        %v624 = vld [vmem:[#allocation4 + $0x40] sm:$0xff]
        %v625 = vld [vmem:[#allocation4 + $0x48] sm:$0xff]
        %v626 = vld [vmem:[#allocation4 + $0x50] sm:$0xff]
        %v627 = vld [vmem:[#allocation4 + $0x58] sm:$0xff]
        %v628 = vld [vmem:[#allocation4 + $0x60] sm:$0xff]
        %v629 = vld [vmem:[#allocation4 + $0x68] sm:$0xff]
        %v630 = vld [vmem:[#allocation4 + $0x70] sm:$0xff]
        %v631 = vld [vmem:[#allocation4 + $0x78] sm:$0xff]
        %v632 = vld [vmem:[%s6] sm:$0x1]
        %v634 = vlaneseq
        %v635 = vshrl.u32 %v634, 7
        %v636 = vsub.s32 0, %v635
        %v637 = vrot.slane %v632, %v636
        %639 = vmatprep.subr.mxu0 0.0
        %640 = vmatpush1.msra.mxu0 %v631
        %641 = vmatprep.subr.mxu0 0.0
        %642 = vmatpush1.msra.mxu0 %v630
        %643 = vmatprep.subr.mxu0 0.0
        %644 = vmatpush1.msra.mxu0 %v629
        %645 = vmatprep.subr.mxu0 0.0
        %646 = vmatpush1.msra.mxu0 %v628
        %647 = vmatprep.subr.mxu0 0.0
        %648 = vmatpush1.msra.mxu0 %v627
        %649 = vmatprep.subr.mxu0 0.0
        %650 = vmatpush1.msra.mxu0 %v626
        %651 = vmatprep.subr.mxu0 0.0
        %652 = vmatpush1.msra.mxu0 %v625
        %653 = vmatprep.subr.mxu0 0.0
        %654 = vmatpush1.msra.mxu0 %v624
        %655 = vmatprep.subr.mxu0 0.0
        %656 = vmatpush1.msra.mxu0 %v623
        %657 = vmatprep.subr.mxu0 0.0
        %658 = vmatpush1.msra.mxu0 %v622
        %659 = vmatprep.subr.mxu0 0.0
        %660 = vmatpush1.msra.mxu0 %v621
        %661 = vmatprep.subr.mxu0 0.0
        %662 = vmatpush1.msra.mxu0 %v620
        %663 = vmatprep.subr.mxu0 0.0
        %664 = vmatpush1.msra.mxu0 %v619
        %665 = vmatprep.subr.mxu0 0.0
        %666 = vmatpush1.msra.mxu0 %v618
        %667 = vmatprep.subr.mxu0 0.0
        %668 = vmatpush1.msra.mxu0 %v617
        %669 = vmatprep.subr.mxu0 0.0
        %670 = vmatpush1.msra.mxu0 %v616
        %671 = vmatprep.subr.mxu0 0.0
        %672 = vmatpush2.msra.mxu0 0.0
        %673 = vmatprep.subr.mxu0 0.0
        %674 = vmatpush2.msra.mxu0 0.0
        %675 = vmatprep.subr.mxu0 0.0
        %676 = vmatpush2.msra.mxu0 0.0
        %677 = vmatprep.subr.mxu0 0.0
        %678 = vmatpush2.msra.mxu0 0.0
        %679 = vmatprep.subr.mxu0 0.0
        %680 = vmatpush2.msra.mxu0 0.0
        %681 = vmatprep.subr.mxu0 0.0
        %682 = vmatpush2.msra.mxu0 0.0
        %683 = vmatprep.subr.mxu0 0.0
        %684 = vmatpush2.msra.mxu0 0.0
        %685 = vmatprep.subr.mxu0 0.0
        %686 = vmatpush2.msra.mxu0 0.0
        %687 = vmatprep.subr.mxu0 0.0
        %688 = vmatpush2.msra.mxu0 0.0
        %689 = vmatprep.subr.mxu0 0.0
        %690 = vmatpush2.msra.mxu0 0.0
        %691 = vmatprep.subr.mxu0 0.0
        %692 = vmatpush2.msra.mxu0 0.0
        %693 = vmatprep.subr.mxu0 0.0
        %694 = vmatpush2.msra.mxu0 0.0
        %695 = vmatprep.subr.mxu0 0.0
        %696 = vmatpush2.msra.mxu0 0.0
        %697 = vmatprep.subr.mxu0 0.0
        %698 = vmatpush2.msra.mxu0 0.0
        %699 = vmatprep.subr.mxu0 0.0
        %700 = vmatpush2.msra.mxu0 0.0
        %701 = vmatprep.subr.mxu0 0.0
        %702 = vmatpush2.msra.mxu0 0.0
        %703 = vmatprep.mubr.f32.mxu0 0.0
        %704 = vmatmul.mubr.f32.gmra.mxu0 %v614
        %v705 = vpop.f32.mrf.mxu0
        %v706 = vadd.f32 %v637, %v705
        %v707 = vpop.f32.mrf.mxu0
        %708 = vmatprep.mubr.f32.mxu0 0.0
        %709 = vmatmul.mubr.f32.gmra.mxu0 %v615
        %v710 = vpop.f32.mrf.mxu0
        %v711 = vadd.f32 %v637, %v710
        %v712 = vpop.f32.mrf.mxu0
        %713 = vdwg.mxu0
        %v714 = vsub.f32 0.0, %v706
        %v715 = vsub.f32 0.0, %v711
        %v716 = vmul.f32 %v714, 1.442695
        %v717 = vpow.pop %v716
        %v718 = vmul.f32 %v715, 1.442695
        %v719 = vpow.pop %v718
        %v720 = vadd.f32 %v717, 1.0
        %v721 = vadd.f32 %v719, 1.0
        %v722 = vrcp.pop %v720
        %v723 = vmul.f32 1.0, %v722
        %v724 = vrcp.pop %v721
        %v725 = vmul.f32 1.0, %v724
        %726 = vst [vmem:[%s310] sm:$0xff] %v723
        %727 = vst [vmem:[%s310 + $0x8] sm:$0xff] %v725
        %s728 = smul.u32 2, %s20
        %p729 = scmp.lt.s32.totalorder %s728, 3
        %s730 = scalar_select %p729, %s728, 3
        %s731 = smul.addr %s730, 8
        %s732 = scalar_lea.vmem %s7, %s731
        // Predicated region
        $region57: #{fused_mlp.1} parent=47 // pred_check
          %p733 = pneg %p190
        $region58: #{fused_mlp.1} parent=47 // pred_check_branch
          %735 = sbr.rel (%p733) target = $region60
        $region59: #{fused_mlp.1} parent=47 // pred_region
          %s736 = smul.u32 2, %s20
        $region60: #{fused_mlp.1} parent=47 // pred_fallthru
          _
      $region48: #{fused_mlp.1} parent=5 // pred_fallthru
        _
      %p737 = scmp.le.s32.totalorder 2, %s15
      // Predicated region
      $region61: #{fused_mlp.1} parent=5 // pred_check
        %p738 = pneg %p737
      $region62: #{fused_mlp.1} parent=5 // pred_check_branch
        %740 = sbr.rel (%p738) target = $region64
      $region63: #{fused_mlp.1} parent=5 // pred_region
        %s741 = ssub.s32 %s15, 2
        // Predicated region
        $region65: #{fused_mlp.1} parent=63 // pred_check
          %p742 = pneg %p196
        $region66: #{fused_mlp.1} parent=63 // pred_check_branch
          %744 = sbr.rel (%p742) target = $region68
        $region67: #{fused_mlp.1} parent=63 // pred_region
          %s745 = smul.u32 2, %s21
          %p746 = scmp.lt.s32.totalorder %s745, 3
          %s747 = scalar_select %p746, %s745, 3
          %s748 = smul.addr %s747, 8
          %s749 = scalar_lea.vmem %s7, %s748
        $region68: #{fused_mlp.1} parent=63 // pred_fallthru
          _
      $region64: #{fused_mlp.1} parent=5 // pred_fallthru
        _
    $region6: #{fused_mlp.1} parent=1 // loop_footer
      %s19 = sadd.s32 1, %s15
    $region7: #{fused_mlp.1} parent=1 // loop_footer_branch
      %14 = sbr.rel target = $region3
    $region8: #{fused_mlp.1} parent=1 // loop_exit
      _
    %750 = vsyncpa [#allocation3], 1
    %s751 = scalar_lea.sflag [#allocation3], 1
    %752 = vsyncpa %s751, 1
    %753 = vsyncpa [#allocation5], 1

</llo_original>
